<compile_context>
chip_gen: v6e
topology: v6e:2x2x1
jax: 0.10.0
libtpu: 0.0.40
codegen_flags: <defaults>
</compile_context>

<pallas_src>
import jax
import jax.numpy as jnp
from jax.experimental import pallas as pl
from jax.experimental.pallas import tpu as pltpu

BN_EPS = 1e-5
MAX_TILE_ROWS = 2048  # packed rows per grid step (~1 MiB f32 input at 128 lanes)


def _round_up(n, m):
    return (n + m - 1) // m * m


def _deep_protein_kernel(x_ref, w1_ref, b1_ref, w2_ref, b2_ref, w3_ref, b3_ref, o_ref):
    hi = jax.lax.Precision.HIGHEST
    x = x_ref[...]

    # block 1: Linear -> ReLU   (BN1 pre-folded into W2/b2)
    h = jnp.dot(x, w1_ref[...], precision=hi,
                preferred_element_type=jnp.float32) + b1_ref[...]
    h = jnp.maximum(h, 0.0)

    # block 2: Linear -> ReLU   (BN2 pre-folded into W3/b3)
    h = jnp.dot(h, w2_ref[...], precision=hi,
                preferred_element_type=jnp.float32) + b2_ref[...]
    h = jnp.maximum(h, 0.0)

    # head: Linear(H2 -> 1) applied per packed segment -> (tile_rows, p), then sigmoid.
    z = jnp.dot(h, w3_ref[...], precision=hi,
                preferred_element_type=jnp.float32) + b3_ref[...]
    o_ref[...] = 1.0 / (1.0 + jnp.exp(-z))


def _fold_batchnorm(params):
    """Fold eval-mode BatchNorm affines into the next Linear (algebraically exact)."""
    (w1, b1, g1, beta1, m1, v1,
     w2, b2, g2, beta2, m2, v2,
     w3, b3) = params
    s1 = g1 * jax.lax.rsqrt(v1 + BN_EPS)     # (1, H1)
    t1 = beta1 - m1 * s1
    s2 = g2 * jax.lax.rsqrt(v2 + BN_EPS)     # (1, H2)
    t2 = beta2 - m2 * s2
    w2f = s1.reshape(-1, 1) * w2             # (H1, H2)
    b2f = t1 @ w2 + b2                       # (1, H2)
    w3f = s2.reshape(-1, 1) * w3             # (H2, 1)
    b3f = t2 @ w3 + b3                       # (1, 1)
    return (w1, b1, w2f, b2f, w3f, b3f)


def _pack_block_diag(folded, p):
    """Replicate weights block-diagonally so p batch rows share one sublane row."""
    if p == 1:
        return folded
    w1, b1, w2f, b2f, w3f, b3f = folded
    eye = jnp.eye(p, dtype=w1.dtype)
    return (jnp.kron(eye, w1), jnp.tile(b1, (1, p)),
            jnp.kron(eye, w2f), jnp.tile(b2f, (1, p)),
            jnp.kron(eye, w3f), jnp.tile(b3f, (1, p)))


def _choose_tile_rows(rows):
    if rows <= MAX_TILE_ROWS:
        return rows                      # single full-extent block (always layout-legal)
    steps = pl.cdiv(rows, MAX_TILE_ROWS)
    if steps % 2:
        steps += 1                       # even step count -> both v7x TensorCores busy
    return _round_up(pl.cdiv(rows, steps), 8)


def deep_protein_net_forward(x, params, *, tile_rows=None):
    """x: (B, input_dim) f32.  Returns (B, 1) f32 sigmoid probabilities."""
    B, D = x.shape
    p = 4 if B % 4 == 0 else (2 if B % 2 == 0 else 1)

    folded = _fold_batchnorm(params)
    packed = _pack_block_diag(folded, p)

    xp = x.reshape(B // p, p * D)        # contiguous row-major reshape: no HBM copy
    rows, lanes = xp.shape
    if tile_rows is None:
        tile_rows = _choose_tile_rows(rows)
    tile_rows = int(tile_rows)
    num_tiles = pl.cdiv(rows, tile_rows)  # no padding: last block may read OOB garbage
    p_out = packed[-1].shape[1]           # = p

    out = pl.pallas_call(
        _deep_protein_kernel,
        out_shape=jax.ShapeDtypeStruct((rows, p_out), jnp.float32),
        grid_spec=pl.GridSpec(
            grid=(num_tiles,),
            in_specs=[pl.BlockSpec((tile_rows, lanes), lambda i: (i, 0))] +
                     [pl.BlockSpec(w.shape, lambda i: (0, 0)) for w in packed],
            out_specs=pl.BlockSpec((tile_rows, p_out), lambda i: (i, 0)),
        ),
        compiler_params=pltpu.CompilerParams(
            dimension_semantics=("parallel",),
            vmem_limit_bytes=32 * 1024 * 1024,
        ),
    )(xp, *packed)

    return out.reshape(B, 1)


def init_params(key, input_dim, hidden_dims):
    """Deterministic init mimicking PyTorch Linear defaults; BN params at PyTorch defaults."""
    params = []
    dims = [input_dim] + list(hidden_dims)
    for i in range(len(hidden_dims)):
        fan_in, fan_out = dims[i], dims[i + 1]
        key, kw, kb = jax.random.split(key, 3)
        bound = 1.0 / (fan_in ** 0.5)
        w = jax.random.uniform(kw, (fan_in, fan_out), jnp.float32, -bound, bound)
        b = jax.random.uniform(kb, (1, fan_out), jnp.float32, -bound, bound)
        gamma = jnp.ones((1, fan_out), jnp.float32)
        beta = jnp.zeros((1, fan_out), jnp.float32)
        rmean = jnp.zeros((1, fan_out), jnp.float32)
        rvar = jnp.ones((1, fan_out), jnp.float32)
        params += [w, b, gamma, beta, rmean, rvar]
    fan_in = dims[-1]
    key, kw, kb = jax.random.split(key, 3)
    bound = 1.0 / (fan_in ** 0.5)
    w3 = jax.random.uniform(kw, (fan_in, 1), jnp.float32, -bound, bound)
    b3 = jax.random.uniform(kb, (1, 1), jnp.float32, -bound, bound)
    params += [w3, b3]
    return tuple(params)


def reference_forward(x, params):
    (w1, b1, g1, beta1, m1, v1,
     w2, b2, g2, beta2, m2, v2,
     w3, b3) = params
    with jax.default_matmul_precision("highest"):
        h = jnp.maximum(x @ w1 + b1, 0.0)
        h = (h - m1) / jnp.sqrt(v1 + BN_EPS) * g1 + beta1
        h = jnp.maximum(h @ w2 + b2, 0.0)
        h = (h - m2) / jnp.sqrt(v2 + BN_EPS) * g2 + beta2
        return 1.0 / (1.0 + jnp.exp(-(h @ w3 + b3)))


if __name__ == "__main__":
    key = jax.random.PRNGKey(0)
    INPUT_DIM = 32
    HIDDEN_DIMS = [64, 32]

    key, kx, kp = jax.random.split(key, 3)
    params = init_params(kp, INPUT_DIM, HIDDEN_DIMS)

    # primary small-shape check (B=8, p=4 packing) through the jitted wrapper
    x = jax.random.normal(kx, (8, INPUT_DIM), jnp.float32)
    fwd = jax.jit(lambda xx: deep_protein_net_forward(xx, params))
    out = jax.block_until_ready(fwd(x))
    ref = reference_forward(x, params)
    assert out.shape == (8, 1)
    assert jnp.allclose(out, ref, atol=1e-5, rtol=1e-5), "mismatch vs JAX reference (B=8)"

    # ragged multi-step grid: B=200 -> 50 packed rows, tile_rows=16 -> 4 steps, last ragged
    key, kx2 = jax.random.split(key)
    x2 = jax.random.normal(kx2, (200, INPUT_DIM), jnp.float32)
    out2 = jax.block_until_ready(deep_protein_net_forward(x2, params, tile_rows=16))
    ref2 = reference_forward(x2, params)
    assert out2.shape == (200, 1)
    assert jnp.allclose(out2, ref2, atol=1e-5, rtol=1e-5), "mismatch vs JAX reference (B=200)"

    # odd batch -> packing falls back to p=1 (no padding anywhere)
    key, kx3 = jax.random.split(key)
    x3 = jax.random.normal(kx3, (7, INPUT_DIM), jnp.float32)
    out3 = jax.block_until_ready(deep_protein_net_forward(x3, params))
    ref3 = reference_forward(x3, params)
    assert out3.shape == (7, 1)
    assert jnp.allclose(out3, ref3, atol=1e-5, rtol=1e-5), "mismatch vs JAX reference (B=7)"

    print("KERNEL_OK")
</pallas_src>

<mosaic_0001>
module attributes {stable_mosaic.version = 11 : i64} {
  func.func @_deep_protein_kernel(%arg0: i32, %arg1: memref<2x128xf32, #tpu.memory_space<vmem>>, %arg2: memref<128x256xf32, #tpu.memory_space<vmem>>, %arg3: memref<1x256xf32, #tpu.memory_space<vmem>>, %arg4: memref<256x128xf32, #tpu.memory_space<vmem>>, %arg5: memref<1x128xf32, #tpu.memory_space<vmem>>, %arg6: memref<128x4xf32, #tpu.memory_space<vmem>>, %arg7: memref<1x4xf32, #tpu.memory_space<vmem>>, %arg8: memref<2x4xf32, #tpu.memory_space<vmem>>) attributes {dimension_semantics = [#tpu.dimension_semantics<parallel>], iteration_bounds = array<i64: 1>, scalar_prefetch = 0 : i64, scratch_operands = 0 : i64, tpu.core_type = #tpu.core_type<tc>, window_params = [{transform_indices = @transform_0, window_bounds = array<i64: 2, 128>}, {pipeline_mode = #tpu.pipeline_mode<synchronous>, transform_indices = @transform_1, window_bounds = array<i64: 128, 256>}, {pipeline_mode = #tpu.pipeline_mode<synchronous>, transform_indices = @transform_2, window_bounds = array<i64: 1, 256>}, {pipeline_mode = #tpu.pipeline_mode<synchronous>, transform_indices = @transform_3, window_bounds = array<i64: 256, 128>}, {pipeline_mode = #tpu.pipeline_mode<synchronous>, transform_indices = @transform_4, window_bounds = array<i64: 1, 128>}, {pipeline_mode = #tpu.pipeline_mode<synchronous>, transform_indices = @transform_5, window_bounds = array<i64: 128, 4>}, {pipeline_mode = #tpu.pipeline_mode<synchronous>, transform_indices = @transform_6, window_bounds = array<i64: 1, 4>}, {transform_indices = @transform_7, window_bounds = array<i64: 2, 4>}]} {
    %c0 = arith.constant 0 : index
    %c0_0 = arith.constant 0 : index
    %0 = vector.load %arg1[%c0, %c0_0] : memref<2x128xf32, #tpu.memory_space<vmem>>, vector<2x128xf32>
    %c0_1 = arith.constant 0 : index
    %c0_2 = arith.constant 0 : index
    %1 = vector.load %arg2[%c0_1, %c0_2] : memref<128x256xf32, #tpu.memory_space<vmem>>, vector<128x256xf32>
    %cst = arith.constant dense<0.000000e+00> : vector<2x256xf32>
    %2 = tpu.matmul %0, %1, %cst {dimension_numbers = #tpu.dot_dimension_numbers<[1], [0], [0], [1], [0, 0, 1, 1], [], []>, precision = #tpu.contract_precision<fp32>} : vector<2x128xf32>, vector<128x256xf32>, vector<2x256xf32> -> vector<2x256xf32>
    %c0_3 = arith.constant 0 : index
    %c0_4 = arith.constant 0 : index
    %3 = vector.load %arg3[%c0_3, %c0_4] : memref<1x256xf32, #tpu.memory_space<vmem>>, vector<1x256xf32>
    %4 = vector.broadcast %3 : vector<1x256xf32> to vector<2x256xf32>
    %5 = arith.addf %2, %4 : vector<2x256xf32>
    %cst_5 = arith.constant 0.000000e+00 : f32
    %6 = vector.broadcast %cst_5 : f32 to vector<2x256xf32>
    %7 = arith.maximumf %5, %6 : vector<2x256xf32>
    %c0_6 = arith.constant 0 : index
    %c0_7 = arith.constant 0 : index
    %8 = vector.load %arg4[%c0_6, %c0_7] : memref<256x128xf32, #tpu.memory_space<vmem>>, vector<256x128xf32>
    %cst_8 = arith.constant dense<0.000000e+00> : vector<2x128xf32>
    %9 = tpu.matmul %7, %8, %cst_8 {dimension_numbers = #tpu.dot_dimension_numbers<[1], [0], [0], [1], [0, 0, 1, 1], [], []>, precision = #tpu.contract_precision<fp32>} : vector<2x256xf32>, vector<256x128xf32>, vector<2x128xf32> -> vector<2x128xf32>
    %c0_9 = arith.constant 0 : index
    %c0_10 = arith.constant 0 : index
    %10 = vector.load %arg5[%c0_9, %c0_10] : memref<1x128xf32, #tpu.memory_space<vmem>>, vector<1x128xf32>
    %11 = vector.broadcast %10 : vector<1x128xf32> to vector<2x128xf32>
    %12 = arith.addf %9, %11 : vector<2x128xf32>
    %cst_11 = arith.constant 0.000000e+00 : f32
    %13 = vector.broadcast %cst_11 : f32 to vector<2x128xf32>
    %14 = arith.maximumf %12, %13 : vector<2x128xf32>
    %c0_12 = arith.constant 0 : index
    %c0_13 = arith.constant 0 : index
    %15 = vector.load %arg6[%c0_12, %c0_13] : memref<128x4xf32, #tpu.memory_space<vmem>>, vector<128x4xf32>
    %cst_14 = arith.constant dense<0.000000e+00> : vector<2x4xf32>
    %16 = tpu.matmul %14, %15, %cst_14 {dimension_numbers = #tpu.dot_dimension_numbers<[1], [0], [0], [1], [0, 0, 1, 1], [], []>, precision = #tpu.contract_precision<fp32>} : vector<2x128xf32>, vector<128x4xf32>, vector<2x4xf32> -> vector<2x4xf32>
    %c0_15 = arith.constant 0 : index
    %c0_16 = arith.constant 0 : index
    %17 = vector.load %arg7[%c0_15, %c0_16] : memref<1x4xf32, #tpu.memory_space<vmem>>, vector<1x4xf32>
    %18 = vector.broadcast %17 : vector<1x4xf32> to vector<2x4xf32>
    %19 = arith.addf %16, %18 : vector<2x4xf32>
    %cst_17 = arith.constant 0.000000e+00 : f32
    %20 = vector.broadcast %cst_17 : f32 to vector<2x4xf32>
    %21 = arith.subf %20, %19 : vector<2x4xf32>
    %22 = math.exp %21 : vector<2x4xf32>
    %cst_18 = arith.constant 1.000000e+00 : f32
    %23 = vector.broadcast %cst_18 : f32 to vector<2x4xf32>
    %24 = arith.addf %23, %22 : vector<2x4xf32>
    %cst_19 = arith.constant 1.000000e+00 : f32
    %25 = vector.broadcast %cst_19 : f32 to vector<2x4xf32>
    %26 = arith.divf %25, %24 : vector<2x4xf32>
    %c0_20 = arith.constant 0 : index
    %c0_21 = arith.constant 0 : index
    %27 = vector.load %arg8[%c0_20, %c0_21] : memref<2x4xf32, #tpu.memory_space<vmem>>, vector<2x4xf32>
    tpu.vector_store %arg8[%c0_20, %c0_21], %26 {strides = array<i32>} : memref<2x4xf32, #tpu.memory_space<vmem>>, vector<2x4xf32>,
    return
  }
  func.func @transform_0(%arg0: i32) -> (i32, i32) {
    %c0_i32 = arith.constant 0 : i32
    %c0_i32_0 = arith.constant 0 : i32
    return %arg0, %c0_i32 : i32, i32
  }
  func.func @transform_1(%arg0: i32) -> (i32, i32) {
    %c0_i32 = arith.constant 0 : i32
    %c0_i32_0 = arith.constant 0 : i32
    %c0_i32_1 = arith.constant 0 : i32
    return %c0_i32, %c0_i32_0 : i32, i32
  }
  func.func @transform_2(%arg0: i32) -> (i32, i32) {
    %c0_i32 = arith.constant 0 : i32
    %c0_i32_0 = arith.constant 0 : i32
    %c0_i32_1 = arith.constant 0 : i32
    return %c0_i32, %c0_i32_0 : i32, i32
  }
  func.func @transform_3(%arg0: i32) -> (i32, i32) {
    %c0_i32 = arith.constant 0 : i32
    %c0_i32_0 = arith.constant 0 : i32
    %c0_i32_1 = arith.constant 0 : i32
    return %c0_i32, %c0_i32_0 : i32, i32
  }
  func.func @transform_4(%arg0: i32) -> (i32, i32) {
    %c0_i32 = arith.constant 0 : i32
    %c0_i32_0 = arith.constant 0 : i32
    %c0_i32_1 = arith.constant 0 : i32
    return %c0_i32, %c0_i32_0 : i32, i32
  }
  func.func @transform_5(%arg0: i32) -> (i32, i32) {
    %c0_i32 = arith.constant 0 : i32
    %c0_i32_0 = arith.constant 0 : i32
    %c0_i32_1 = arith.constant 0 : i32
    return %c0_i32, %c0_i32_0 : i32, i32
  }
  func.func @transform_6(%arg0: i32) -> (i32, i32) {
    %c0_i32 = arith.constant 0 : i32
    %c0_i32_0 = arith.constant 0 : i32
    %c0_i32_1 = arith.constant 0 : i32
    return %c0_i32, %c0_i32_0 : i32, i32
  }
  func.func @transform_7(%arg0: i32) -> (i32, i32) {
    %c0_i32 = arith.constant 0 : i32
    %c0_i32_0 = arith.constant 0 : i32
    return %arg0, %c0_i32 : i32, i32
  }
}

</mosaic_0001>

<llo_original>
// kernel: _lambda_.1
$region0: #{_lambda_.1}
  #allocation0 [shape = 'u32[]', space=smem, size = 0x4, offset = 0x4, fixed_abs, tag = 'smem constant byte address 0x4 - core index']
  #allocation1 [shape = 'u32[144,128]{1,0:T(1,128)}', space=vmem, size = 0x12000, scoped, tag = 'internal scratch']
  %s0 = inlined_call_operand.vmem [shape: f32[2,128], index: 0, kind: input, shape index: {}]
  %s1 = inlined_call_operand.vmem [shape: f32[128,256], index: 1, kind: input, shape index: {}]
  %s2 = inlined_call_operand.vmem [shape: f32[1,256], index: 2, kind: input, shape index: {}]
  %s3 = inlined_call_operand.vmem [shape: f32[256,128], index: 3, kind: input, shape index: {}]
  %s4 = inlined_call_operand.vmem [shape: f32[1,128], index: 4, kind: input, shape index: {}]
  %s5 = inlined_call_operand.vmem [shape: f32[128,4], index: 5, kind: input, shape index: {}]
  %s6 = inlined_call_operand.vmem [shape: f32[1,4], index: 6, kind: input, shape index: {}]
  %s7 = inlined_call_operand.vmem [shape: f32[2,4], index: 7, kind: output, shape index: {}]
  %s8 = sld [smem:[#allocation0]]
  $region38: #{_lambda_.1} parent=0
    _
  %s10 = ssub.s32 1, %s8
  %s11 = scalar_select 0, %s10, %s8
  // Predicated region
  $region2: #{_lambda_.1} parent=0 // pred_check
    _
  $region3: #{_lambda_.1} parent=0 // pred_check_branch
    %13 = sbr.rel (0) target = $region5
  $region4: #{_lambda_.1} parent=0 // pred_region
    _
  $region5: #{_lambda_.1} parent=0 // pred_fallthru
    _
  // Predicated region
  $region6: #{_lambda_.1} parent=0 // pred_check
    _
  $region7: #{_lambda_.1} parent=0 // pred_check_branch
    %15 = sbr.rel (0) target = $region9
  $region8: #{_lambda_.1} parent=0 // pred_region
    _
  $region9: #{_lambda_.1} parent=0 // pred_fallthru
    _
  // Predicated region
  $region10: #{_lambda_.1} parent=0 // pred_check
    _
  $region11: #{_lambda_.1} parent=0 // pred_check_branch
    %17 = sbr.rel (0) target = $region13
  $region12: #{_lambda_.1} parent=0 // pred_region
    _
  $region13: #{_lambda_.1} parent=0 // pred_fallthru
    _
  // Predicated region
  $region14: #{_lambda_.1} parent=0 // pred_check
    _
  $region15: #{_lambda_.1} parent=0 // pred_check_branch
    %19 = sbr.rel (0) target = $region17
  $region16: #{_lambda_.1} parent=0 // pred_region
    _
  $region17: #{_lambda_.1} parent=0 // pred_fallthru
    _
  // Predicated region
  $region18: #{_lambda_.1} parent=0 // pred_check
    _
  $region19: #{_lambda_.1} parent=0 // pred_check_branch
    %21 = sbr.rel (0) target = $region21
  $region20: #{_lambda_.1} parent=0 // pred_region
    _
  $region21: #{_lambda_.1} parent=0 // pred_fallthru
    _
  // Predicated region
  $region22: #{_lambda_.1} parent=0 // pred_check
    _
  $region23: #{_lambda_.1} parent=0 // pred_check_branch
    %23 = sbr.rel (0) target = $region25
  $region24: #{_lambda_.1} parent=0 // pred_region
    _
  $region25: #{_lambda_.1} parent=0 // pred_fallthru
    _
  // Predicated region
  $region26: #{_lambda_.1} parent=0 // pred_check
    _
  $region27: #{_lambda_.1} parent=0 // pred_check_branch
    %25 = sbr.rel (0) target = $region29
  $region28: #{_lambda_.1} parent=0 // pred_region
    _
  $region29: #{_lambda_.1} parent=0 // pred_fallthru
    _
  %v26 = vld [vmem:[%s0] sm:$0x3]
  %v27 = vld [vmem:[%s1] sm:$0xff]
  %v28 = vld [vmem:[%s1 + $0x8] sm:$0xff]
  %v29 = vld [vmem:[%s1 + $0x10] sm:$0xff]
  %v30 = vld [vmem:[%s1 + $0x18] sm:$0xff]
  %v31 = vld [vmem:[%s1 + $0x20] sm:$0xff]
  %v32 = vld [vmem:[%s1 + $0x28] sm:$0xff]
  %v33 = vld [vmem:[%s1 + $0x30] sm:$0xff]
  %v34 = vld [vmem:[%s1 + $0x38] sm:$0xff]
  %v35 = vld [vmem:[%s1 + $0x40] sm:$0xff]
  %v36 = vld [vmem:[%s1 + $0x48] sm:$0xff]
  %v37 = vld [vmem:[%s1 + $0x50] sm:$0xff]
  %v38 = vld [vmem:[%s1 + $0x58] sm:$0xff]
  %v39 = vld [vmem:[%s1 + $0x60] sm:$0xff]
  %v40 = vld [vmem:[%s1 + $0x68] sm:$0xff]
  %v41 = vld [vmem:[%s1 + $0x70] sm:$0xff]
  %v42 = vld [vmem:[%s1 + $0x78] sm:$0xff]
  %v43 = vld [vmem:[%s1 + $0x80] sm:$0xff]
  %v44 = vld [vmem:[%s1 + $0x88] sm:$0xff]
  %v45 = vld [vmem:[%s1 + $0x90] sm:$0xff]
  %v46 = vld [vmem:[%s1 + $0x98] sm:$0xff]
  %v47 = vld [vmem:[%s1 + $0xa0] sm:$0xff]
  %v48 = vld [vmem:[%s1 + $0xa8] sm:$0xff]
  %v49 = vld [vmem:[%s1 + $0xb0] sm:$0xff]
  %v50 = vld [vmem:[%s1 + $0xb8] sm:$0xff]
  %v51 = vld [vmem:[%s1 + $0xc0] sm:$0xff]
  %v52 = vld [vmem:[%s1 + $0xc8] sm:$0xff]
  %v53 = vld [vmem:[%s1 + $0xd0] sm:$0xff]
  %v54 = vld [vmem:[%s1 + $0xd8] sm:$0xff]
  %v55 = vld [vmem:[%s1 + $0xe0] sm:$0xff]
  %v56 = vld [vmem:[%s1 + $0xe8] sm:$0xff]
  %v57 = vld [vmem:[%s1 + $0xf0] sm:$0xff]
  %v58 = vld [vmem:[%s1 + $0xf8] sm:$0xff]
  %v59 = vld [vmem:[%s2] sm:$0x3]
  %v61 = vlaneseq
  %v62 = vshrl.u32 %v61, 7
  %v63 = vsub.s32 0, %v62
  %v64 = vrot.slane %v59, %v63
  %v65 = vlaneseq
  %v66 = vshrl.u32 %v65, 7
  %v67 = vsub.s32 1, %v66
  %v68 = vrot.slane %v59, %v67
  %v71 = vand.u32 %v58, 4294901760
  %72 = vmatprep.subr.mxu0 %v71
  %v73 = vand.u32 %v57, 4294901760
  %74 = vmatpush1.msra.mxu0 %v73
  %v75 = vand.u32 %v56, 4294901760
  %76 = vmatprep.subr.mxu0 %v75
  %v77 = vand.u32 %v55, 4294901760
  %78 = vmatpush1.msra.mxu0 %v77
  %v79 = vand.u32 %v54, 4294901760
  %80 = vmatprep.subr.mxu0 %v79
  %v81 = vand.u32 %v53, 4294901760
  %82 = vmatpush1.msra.mxu0 %v81
  %v83 = vand.u32 %v52, 4294901760
  %84 = vmatprep.subr.mxu0 %v83
  %v85 = vand.u32 %v51, 4294901760
  %86 = vmatpush1.msra.mxu0 %v85
  %v87 = vand.u32 %v50, 4294901760
  %88 = vmatprep.subr.mxu0 %v87
  %v89 = vand.u32 %v49, 4294901760
  %90 = vmatpush1.msra.mxu0 %v89
  %v91 = vand.u32 %v48, 4294901760
  %92 = vmatprep.subr.mxu0 %v91
  %v93 = vand.u32 %v47, 4294901760
  %94 = vmatpush1.msra.mxu0 %v93
  %v95 = vand.u32 %v46, 4294901760
  %96 = vmatprep.subr.mxu0 %v95
  %v97 = vand.u32 %v45, 4294901760
  %98 = vmatpush1.msra.mxu0 %v97
  %v99 = vand.u32 %v44, 4294901760
  %100 = vmatprep.subr.mxu0 %v99
  %v101 = vand.u32 %v43, 4294901760
  %102 = vmatpush1.msra.mxu0 %v101
  %v103 = vand.u32 %v42, 4294901760
  %104 = vmatprep.subr.mxu0 %v103
  %v105 = vand.u32 %v41, 4294901760
  %106 = vmatpush1.msra.mxu0 %v105
  %v107 = vand.u32 %v40, 4294901760
  %108 = vmatprep.subr.mxu0 %v107
  %v109 = vand.u32 %v39, 4294901760
  %110 = vmatpush1.msra.mxu0 %v109
  %v111 = vand.u32 %v38, 4294901760
  %112 = vmatprep.subr.mxu0 %v111
  %v113 = vand.u32 %v37, 4294901760
  %114 = vmatpush1.msra.mxu0 %v113
  %v115 = vand.u32 %v36, 4294901760
  %116 = vmatprep.subr.mxu0 %v115
  %v117 = vand.u32 %v35, 4294901760
  %118 = vmatpush1.msra.mxu0 %v117
  %v119 = vand.u32 %v34, 4294901760
  %120 = vmatprep.subr.mxu0 %v119
  %v121 = vand.u32 %v33, 4294901760
  %122 = vmatpush1.msra.mxu0 %v121
  %v123 = vand.u32 %v32, 4294901760
  %124 = vmatprep.subr.mxu0 %v123
  %v125 = vand.u32 %v31, 4294901760
  %126 = vmatpush1.msra.mxu0 %v125
  %v127 = vand.u32 %v30, 4294901760
  %128 = vmatprep.subr.mxu0 %v127
  %v129 = vand.u32 %v29, 4294901760
  %130 = vmatpush1.msra.mxu0 %v129
  %v131 = vand.u32 %v28, 4294901760
  %132 = vmatprep.subr.mxu0 %v131
  %v133 = vand.u32 %v27, 4294901760
  %134 = vmatpush1.msra.mxu0 %v133
  %135 = vmatprep.subr.mxu0 0.0
  %136 = vmatpush2.msra.mxu0 0.0
  %137 = vmatprep.subr.mxu0 0.0
  %138 = vmatpush2.msra.mxu0 0.0
  %139 = vmatprep.subr.mxu0 0.0
  %140 = vmatpush2.msra.mxu0 0.0
  %141 = vmatprep.subr.mxu0 0.0
  %142 = vmatpush2.msra.mxu0 0.0
  %143 = vmatprep.subr.mxu0 0.0
  %144 = vmatpush2.msra.mxu0 0.0
  %145 = vmatprep.subr.mxu0 0.0
  %146 = vmatpush2.msra.mxu0 0.0
  %147 = vmatprep.subr.mxu0 0.0
  %148 = vmatpush2.msra.mxu0 0.0
  %149 = vmatprep.subr.mxu0 0.0
  %150 = vmatpush2.msra.mxu0 0.0
  %151 = vmatprep.subr.mxu0 0.0
  %152 = vmatpush2.msra.mxu0 0.0
  %153 = vmatprep.subr.mxu0 0.0
  %154 = vmatpush2.msra.mxu0 0.0
  %155 = vmatprep.subr.mxu0 0.0
  %156 = vmatpush2.msra.mxu0 0.0
  %157 = vmatprep.subr.mxu0 0.0
  %158 = vmatpush2.msra.mxu0 0.0
  %159 = vmatprep.subr.mxu0 0.0
  %160 = vmatpush2.msra.mxu0 0.0
  %161 = vmatprep.subr.mxu0 0.0
  %162 = vmatpush2.msra.mxu0 0.0
  %163 = vmatprep.subr.mxu0 0.0
  %164 = vmatpush2.msra.mxu0 0.0
  %165 = vmatprep.subr.mxu0 0.0
  %166 = vmatpush2.msra.mxu0 0.0
  %167 = vmatprep.mubr.f32.mxu0 0.0
  %v168 = vand.u32 %v26, 4294901760
  %v169 = vsub.f32 %v26, %v168
  %v170 = vand.u32 %v169, 4294901760
  %v171 = vsub.f32 %v169, %v170
  %v172 = vand.u32 %v171, 4294901760
  %173 = vmatmul.mubr.f32.gmra.mxu0 %v172
  %v174 = vpop.f32.mrf.mxu0
  %v175 = vadd.f32 %v64, %v174
  %v176 = vpop.f32.mrf.mxu0
  %v177 = vadd.f32 %v68, %v176
  %178 = vdwg.mxu0
  %v179 = vand.u32 %v58, 4294901760
  %v180 = vsub.f32 %v58, %v179
  %v181 = vand.u32 %v180, 4294901760
  %v182 = vsub.f32 %v180, %v181
  %v183 = vand.u32 %v182, 4294901760
  %184 = vmatprep.subr.mxu0 %v183
  %v185 = vand.u32 %v57, 4294901760
  %v186 = vsub.f32 %v57, %v185
  %v187 = vand.u32 %v186, 4294901760
  %v188 = vsub.f32 %v186, %v187
  %v189 = vand.u32 %v188, 4294901760
  %190 = vmatpush1.msra.mxu0 %v189
  %v191 = vand.u32 %v56, 4294901760
  %v192 = vsub.f32 %v56, %v191
  %v193 = vand.u32 %v192, 4294901760
  %v194 = vsub.f32 %v192, %v193
  %v195 = vand.u32 %v194, 4294901760
  %196 = vmatprep.subr.mxu0 %v195
  %v197 = vand.u32 %v55, 4294901760
  %v198 = vsub.f32 %v55, %v197
  %v199 = vand.u32 %v198, 4294901760
  %v200 = vsub.f32 %v198, %v199
  %v201 = vand.u32 %v200, 4294901760
  %202 = vmatpush1.msra.mxu0 %v201
  %v203 = vand.u32 %v54, 4294901760
  %v204 = vsub.f32 %v54, %v203
  %v205 = vand.u32 %v204, 4294901760
  %v206 = vsub.f32 %v204, %v205
  %v207 = vand.u32 %v206, 4294901760
  %208 = vmatprep.subr.mxu0 %v207
  %v209 = vand.u32 %v53, 4294901760
  %v210 = vsub.f32 %v53, %v209
  %v211 = vand.u32 %v210, 4294901760
  %v212 = vsub.f32 %v210, %v211
  %v213 = vand.u32 %v212, 4294901760
  %214 = vmatpush1.msra.mxu0 %v213
  %v215 = vand.u32 %v52, 4294901760
  %v216 = vsub.f32 %v52, %v215
  %v217 = vand.u32 %v216, 4294901760
  %v218 = vsub.f32 %v216, %v217
  %v219 = vand.u32 %v218, 4294901760
  %220 = vmatprep.subr.mxu0 %v219
  %v221 = vand.u32 %v51, 4294901760
  %v222 = vsub.f32 %v51, %v221
  %v223 = vand.u32 %v222, 4294901760
  %v224 = vsub.f32 %v222, %v223
  %v225 = vand.u32 %v224, 4294901760
  %226 = vmatpush1.msra.mxu0 %v225
  %v227 = vand.u32 %v50, 4294901760
  %v228 = vsub.f32 %v50, %v227
  %v229 = vand.u32 %v228, 4294901760
  %v230 = vsub.f32 %v228, %v229
  %v231 = vand.u32 %v230, 4294901760
  %232 = vmatprep.subr.mxu0 %v231
  %v233 = vand.u32 %v49, 4294901760
  %v234 = vsub.f32 %v49, %v233
  %v235 = vand.u32 %v234, 4294901760
  %v236 = vsub.f32 %v234, %v235
  %v237 = vand.u32 %v236, 4294901760
  %238 = vmatpush1.msra.mxu0 %v237
  %v239 = vand.u32 %v48, 4294901760
  %v240 = vsub.f32 %v48, %v239
  %v241 = vand.u32 %v240, 4294901760
  %v242 = vsub.f32 %v240, %v241
  %v243 = vand.u32 %v242, 4294901760
  %244 = vmatprep.subr.mxu0 %v243
  %v245 = vand.u32 %v47, 4294901760
  %v246 = vsub.f32 %v47, %v245
  %v247 = vand.u32 %v246, 4294901760
  %v248 = vsub.f32 %v246, %v247
  %v249 = vand.u32 %v248, 4294901760
  %250 = vmatpush1.msra.mxu0 %v249
  %v251 = vand.u32 %v46, 4294901760
  %v252 = vsub.f32 %v46, %v251
  %v253 = vand.u32 %v252, 4294901760
  %v254 = vsub.f32 %v252, %v253
  %v255 = vand.u32 %v254, 4294901760
  %256 = vmatprep.subr.mxu0 %v255
  %v257 = vand.u32 %v45, 4294901760
  %v258 = vsub.f32 %v45, %v257
  %v259 = vand.u32 %v258, 4294901760
  %v260 = vsub.f32 %v258, %v259
  %v261 = vand.u32 %v260, 4294901760
  %262 = vmatpush1.msra.mxu0 %v261
  %v263 = vand.u32 %v44, 4294901760
  %v264 = vsub.f32 %v44, %v263
  %v265 = vand.u32 %v264, 4294901760
  %v266 = vsub.f32 %v264, %v265
  %v267 = vand.u32 %v266, 4294901760
  %268 = vmatprep.subr.mxu0 %v267
  %v269 = vand.u32 %v43, 4294901760
  %v270 = vsub.f32 %v43, %v269
  %v271 = vand.u32 %v270, 4294901760
  %v272 = vsub.f32 %v270, %v271
  %v273 = vand.u32 %v272, 4294901760
  %274 = vmatpush1.msra.mxu0 %v273
  %v275 = vand.u32 %v42, 4294901760
  %v276 = vsub.f32 %v42, %v275
  %v277 = vand.u32 %v276, 4294901760
  %v278 = vsub.f32 %v276, %v277
  %v279 = vand.u32 %v278, 4294901760
  %280 = vmatprep.subr.mxu0 %v279
  %v281 = vand.u32 %v41, 4294901760
  %v282 = vsub.f32 %v41, %v281
  %v283 = vand.u32 %v282, 4294901760
  %v284 = vsub.f32 %v282, %v283
  %v285 = vand.u32 %v284, 4294901760
  %286 = vmatpush1.msra.mxu0 %v285
  %v287 = vand.u32 %v40, 4294901760
  %v288 = vsub.f32 %v40, %v287
  %v289 = vand.u32 %v288, 4294901760
  %v290 = vsub.f32 %v288, %v289
  %v291 = vand.u32 %v290, 4294901760
  %292 = vmatprep.subr.mxu0 %v291
  %v293 = vand.u32 %v39, 4294901760
  %v294 = vsub.f32 %v39, %v293
  %v295 = vand.u32 %v294, 4294901760
  %v296 = vsub.f32 %v294, %v295
  %v297 = vand.u32 %v296, 4294901760
  %298 = vmatpush1.msra.mxu0 %v297
  %v299 = vand.u32 %v38, 4294901760
  %v300 = vsub.f32 %v38, %v299
  %v301 = vand.u32 %v300, 4294901760
  %v302 = vsub.f32 %v300, %v301
  %v303 = vand.u32 %v302, 4294901760
  %304 = vmatprep.subr.mxu0 %v303
  %v305 = vand.u32 %v37, 4294901760
  %v306 = vsub.f32 %v37, %v305
  %v307 = vand.u32 %v306, 4294901760
  %v308 = vsub.f32 %v306, %v307
  %v309 = vand.u32 %v308, 4294901760
  %310 = vmatpush1.msra.mxu0 %v309
  %v311 = vand.u32 %v36, 4294901760
  %v312 = vsub.f32 %v36, %v311
  %v313 = vand.u32 %v312, 4294901760
  %v314 = vsub.f32 %v312, %v313
  %v315 = vand.u32 %v314, 4294901760
  %316 = vmatprep.subr.mxu0 %v315
  %v317 = vand.u32 %v35, 4294901760
  %v318 = vsub.f32 %v35, %v317
  %v319 = vand.u32 %v318, 4294901760
  %v320 = vsub.f32 %v318, %v319
  %v321 = vand.u32 %v320, 4294901760
  %322 = vmatpush1.msra.mxu0 %v321
  %v323 = vand.u32 %v34, 4294901760
  %v324 = vsub.f32 %v34, %v323
  %v325 = vand.u32 %v324, 4294901760
  %v326 = vsub.f32 %v324, %v325
  %v327 = vand.u32 %v326, 4294901760
  %328 = vmatprep.subr.mxu0 %v327
  %v329 = vand.u32 %v33, 4294901760
  %v330 = vsub.f32 %v33, %v329
  %v331 = vand.u32 %v330, 4294901760
  %v332 = vsub.f32 %v330, %v331
  %v333 = vand.u32 %v332, 4294901760
  %334 = vmatpush1.msra.mxu0 %v333
  %v335 = vand.u32 %v32, 4294901760
  %v336 = vsub.f32 %v32, %v335
  %v337 = vand.u32 %v336, 4294901760
  %v338 = vsub.f32 %v336, %v337
  %v339 = vand.u32 %v338, 4294901760
  %340 = vmatprep.subr.mxu0 %v339
  %v341 = vand.u32 %v31, 4294901760
  %v342 = vsub.f32 %v31, %v341
  %v343 = vand.u32 %v342, 4294901760
  %v344 = vsub.f32 %v342, %v343
  %v345 = vand.u32 %v344, 4294901760
  %346 = vmatpush1.msra.mxu0 %v345
  %v347 = vand.u32 %v30, 4294901760
  %v348 = vsub.f32 %v30, %v347
  %v349 = vand.u32 %v348, 4294901760
  %v350 = vsub.f32 %v348, %v349
  %v351 = vand.u32 %v350, 4294901760
  %352 = vmatprep.subr.mxu0 %v351
  %v353 = vand.u32 %v29, 4294901760
  %v354 = vsub.f32 %v29, %v353
  %v355 = vand.u32 %v354, 4294901760
  %v356 = vsub.f32 %v354, %v355
  %v357 = vand.u32 %v356, 4294901760
  %358 = vmatpush1.msra.mxu0 %v357
  %v359 = vand.u32 %v28, 4294901760
  %v360 = vsub.f32 %v28, %v359
  %v361 = vand.u32 %v360, 4294901760
  %v362 = vsub.f32 %v360, %v361
  %v363 = vand.u32 %v362, 4294901760
  %364 = vmatprep.subr.mxu0 %v363
  %v365 = vand.u32 %v27, 4294901760
  %v366 = vsub.f32 %v27, %v365
  %v367 = vand.u32 %v366, 4294901760
  %v368 = vsub.f32 %v366, %v367
  %v369 = vand.u32 %v368, 4294901760
  %370 = vmatpush1.msra.mxu0 %v369
  %371 = vmatprep.subr.mxu0 0.0
  %372 = vmatpush2.msra.mxu0 0.0
  %373 = vmatprep.subr.mxu0 0.0
  %374 = vmatpush2.msra.mxu0 0.0
  %375 = vmatprep.subr.mxu0 0.0
  %376 = vmatpush2.msra.mxu0 0.0
  %377 = vmatprep.subr.mxu0 0.0
  %378 = vmatpush2.msra.mxu0 0.0
  %379 = vmatprep.subr.mxu0 0.0
  %380 = vmatpush2.msra.mxu0 0.0
  %381 = vmatprep.subr.mxu0 0.0
  %382 = vmatpush2.msra.mxu0 0.0
  %383 = vmatprep.subr.mxu0 0.0
  %384 = vmatpush2.msra.mxu0 0.0
  %385 = vmatprep.subr.mxu0 0.0
  %386 = vmatpush2.msra.mxu0 0.0
  %387 = vmatprep.subr.mxu0 0.0
  %388 = vmatpush2.msra.mxu0 0.0
  %389 = vmatprep.subr.mxu0 0.0
  %390 = vmatpush2.msra.mxu0 0.0
  %391 = vmatprep.subr.mxu0 0.0
  %392 = vmatpush2.msra.mxu0 0.0
  %393 = vmatprep.subr.mxu0 0.0
  %394 = vmatpush2.msra.mxu0 0.0
  %395 = vmatprep.subr.mxu0 0.0
  %396 = vmatpush2.msra.mxu0 0.0
  %397 = vmatprep.subr.mxu0 0.0
  %398 = vmatpush2.msra.mxu0 0.0
  %399 = vmatprep.subr.mxu0 0.0
  %400 = vmatpush2.msra.mxu0 0.0
  %401 = vmatprep.subr.mxu0 0.0
  %402 = vmatpush2.msra.mxu0 0.0
  %403 = vmatprep.mubr.f32.mxu0 0.0
  %v404 = vand.u32 %v26, 4294901760
  %405 = vmatmul.mubr.f32.gmra.mxu0 %v404
  %v406 = vpop.f32.mrf.mxu0
  %v407 = vadd.f32 %v175, %v406
  %v408 = vpop.f32.mrf.mxu0
  %v409 = vadd.f32 %v177, %v408
  %410 = vdwg.mxu0
  %v411 = vand.u32 %v58, 4294901760
  %v412 = vsub.f32 %v58, %v411
  %413 = vmatprep.subr.mxu0 %v412
  %v414 = vand.u32 %v57, 4294901760
  %v415 = vsub.f32 %v57, %v414
  %416 = vmatpush1.msra.mxu0 %v415
  %v417 = vand.u32 %v56, 4294901760
  %v418 = vsub.f32 %v56, %v417
  %419 = vmatprep.subr.mxu0 %v418
  %v420 = vand.u32 %v55, 4294901760
  %v421 = vsub.f32 %v55, %v420
  %422 = vmatpush1.msra.mxu0 %v421
  %v423 = vand.u32 %v54, 4294901760
  %v424 = vsub.f32 %v54, %v423
  %425 = vmatprep.subr.mxu0 %v424
  %v426 = vand.u32 %v53, 4294901760
  %v427 = vsub.f32 %v53, %v426
  %428 = vmatpush1.msra.mxu0 %v427
  %v429 = vand.u32 %v52, 4294901760
  %v430 = vsub.f32 %v52, %v429
  %431 = vmatprep.subr.mxu0 %v430
  %v432 = vand.u32 %v51, 4294901760
  %v433 = vsub.f32 %v51, %v432
  %434 = vmatpush1.msra.mxu0 %v433
  %v435 = vand.u32 %v50, 4294901760
  %v436 = vsub.f32 %v50, %v435
  %437 = vmatprep.subr.mxu0 %v436
  %v438 = vand.u32 %v49, 4294901760
  %v439 = vsub.f32 %v49, %v438
  %440 = vmatpush1.msra.mxu0 %v439
  %v441 = vand.u32 %v48, 4294901760
  %v442 = vsub.f32 %v48, %v441
  %443 = vmatprep.subr.mxu0 %v442
  %v444 = vand.u32 %v47, 4294901760
  %v445 = vsub.f32 %v47, %v444
  %446 = vmatpush1.msra.mxu0 %v445
  %v447 = vand.u32 %v46, 4294901760
  %v448 = vsub.f32 %v46, %v447
  %449 = vmatprep.subr.mxu0 %v448
  %v450 = vand.u32 %v45, 4294901760
  %v451 = vsub.f32 %v45, %v450
  %452 = vmatpush1.msra.mxu0 %v451
  %v453 = vand.u32 %v44, 4294901760
  %v454 = vsub.f32 %v44, %v453
  %455 = vmatprep.subr.mxu0 %v454
  %v456 = vand.u32 %v43, 4294901760
  %v457 = vsub.f32 %v43, %v456
  %458 = vmatpush1.msra.mxu0 %v457
  %v459 = vand.u32 %v42, 4294901760
  %v460 = vsub.f32 %v42, %v459
  %461 = vmatprep.subr.mxu0 %v460
  %v462 = vand.u32 %v41, 4294901760
  %v463 = vsub.f32 %v41, %v462
  %464 = vmatpush1.msra.mxu0 %v463
  %v465 = vand.u32 %v40, 4294901760
  %v466 = vsub.f32 %v40, %v465
  %467 = vmatprep.subr.mxu0 %v466
  %v468 = vand.u32 %v39, 4294901760
  %v469 = vsub.f32 %v39, %v468
  %470 = vmatpush1.msra.mxu0 %v469
  %v471 = vand.u32 %v38, 4294901760
  %v472 = vsub.f32 %v38, %v471
  %473 = vmatprep.subr.mxu0 %v472
  %v474 = vand.u32 %v37, 4294901760
  %v475 = vsub.f32 %v37, %v474
  %476 = vmatpush1.msra.mxu0 %v475
  %v477 = vand.u32 %v36, 4294901760
  %v478 = vsub.f32 %v36, %v477
  %479 = vmatprep.subr.mxu0 %v478
  %v480 = vand.u32 %v35, 4294901760
  %v481 = vsub.f32 %v35, %v480
  %482 = vmatpush1.msra.mxu0 %v481
  %v483 = vand.u32 %v34, 4294901760
  %v484 = vsub.f32 %v34, %v483
  %485 = vmatprep.subr.mxu0 %v484
  %v486 = vand.u32 %v33, 4294901760
  %v487 = vsub.f32 %v33, %v486
  %488 = vmatpush1.msra.mxu0 %v487
  %v489 = vand.u32 %v32, 4294901760
  %v490 = vsub.f32 %v32, %v489
  %491 = vmatprep.subr.mxu0 %v490
  %v492 = vand.u32 %v31, 4294901760
  %v493 = vsub.f32 %v31, %v492
  %494 = vmatpush1.msra.mxu0 %v493
  %v495 = vand.u32 %v30, 4294901760
  %v496 = vsub.f32 %v30, %v495
  %497 = vmatprep.subr.mxu0 %v496
  %v498 = vand.u32 %v29, 4294901760
  %v499 = vsub.f32 %v29, %v498
  %500 = vmatpush1.msra.mxu0 %v499
  %v501 = vand.u32 %v28, 4294901760
  %v502 = vsub.f32 %v28, %v501
  %503 = vmatprep.subr.mxu0 %v502
  %v504 = vand.u32 %v27, 4294901760
  %v505 = vsub.f32 %v27, %v504
  %506 = vmatpush1.msra.mxu0 %v505
  %507 = vmatprep.subr.mxu0 0.0
  %508 = vmatpush2.msra.mxu0 0.0
  %509 = vmatprep.subr.mxu0 0.0
  %510 = vmatpush2.msra.mxu0 0.0
  %511 = vmatprep.subr.mxu0 0.0
  %512 = vmatpush2.msra.mxu0 0.0
  %513 = vmatprep.subr.mxu0 0.0
  %514 = vmatpush2.msra.mxu0 0.0
  %515 = vmatprep.subr.mxu0 0.0
  %516 = vmatpush2.msra.mxu0 0.0
  %517 = vmatprep.subr.mxu0 0.0
  %518 = vmatpush2.msra.mxu0 0.0
  %519 = vmatprep.subr.mxu0 0.0
  %520 = vmatpush2.msra.mxu0 0.0
  %521 = vmatprep.subr.mxu0 0.0
  %522 = vmatpush2.msra.mxu0 0.0
  %523 = vmatprep.subr.mxu0 0.0
  %524 = vmatpush2.msra.mxu0 0.0
  %525 = vmatprep.subr.mxu0 0.0
  %526 = vmatpush2.msra.mxu0 0.0
  %527 = vmatprep.subr.mxu0 0.0
  %528 = vmatpush2.msra.mxu0 0.0
  %529 = vmatprep.subr.mxu0 0.0
  %530 = vmatpush2.msra.mxu0 0.0
  %531 = vmatprep.subr.mxu0 0.0
  %532 = vmatpush2.msra.mxu0 0.0
  %533 = vmatprep.subr.mxu0 0.0
  %534 = vmatpush2.msra.mxu0 0.0
  %535 = vmatprep.subr.mxu0 0.0
  %536 = vmatpush2.msra.mxu0 0.0
  %537 = vmatprep.subr.mxu0 0.0
  %538 = vmatpush2.msra.mxu0 0.0
  %539 = vmatprep.mubr.f32.mxu0 0.0
  %v540 = vand.u32 %v26, 4294901760
  %v541 = vsub.f32 %v26, %v540
  %542 = vmatmul.mubr.f32.gmra.mxu0 %v541
  %v543 = vpop.f32.mrf.mxu0
  %v544 = vadd.f32 %v407, %v543
  %v545 = vpop.f32.mrf.mxu0
  %v546 = vadd.f32 %v409, %v545
  %547 = vdwg.mxu0
  %v548 = vand.u32 %v58, 4294901760
  %549 = vmatprep.subr.mxu0 %v548
  %v550 = vand.u32 %v57, 4294901760
  %551 = vmatpush1.msra.mxu0 %v550
  %v552 = vand.u32 %v56, 4294901760
  %553 = vmatprep.subr.mxu0 %v552
  %v554 = vand.u32 %v55, 4294901760
  %555 = vmatpush1.msra.mxu0 %v554
  %v556 = vand.u32 %v54, 4294901760
  %557 = vmatprep.subr.mxu0 %v556
  %v558 = vand.u32 %v53, 4294901760
  %559 = vmatpush1.msra.mxu0 %v558
  %v560 = vand.u32 %v52, 4294901760
  %561 = vmatprep.subr.mxu0 %v560
  %v562 = vand.u32 %v51, 4294901760
  %563 = vmatpush1.msra.mxu0 %v562
  %v564 = vand.u32 %v50, 4294901760
  %565 = vmatprep.subr.mxu0 %v564
  %v566 = vand.u32 %v49, 4294901760
  %567 = vmatpush1.msra.mxu0 %v566
  %v568 = vand.u32 %v48, 4294901760
  %569 = vmatprep.subr.mxu0 %v568
  %v570 = vand.u32 %v47, 4294901760
  %571 = vmatpush1.msra.mxu0 %v570
  %v572 = vand.u32 %v46, 4294901760
  %573 = vmatprep.subr.mxu0 %v572
  %v574 = vand.u32 %v45, 4294901760
  %575 = vmatpush1.msra.mxu0 %v574
  %v576 = vand.u32 %v44, 4294901760
  %577 = vmatprep.subr.mxu0 %v576
  %v578 = vand.u32 %v43, 4294901760
  %579 = vmatpush1.msra.mxu0 %v578
  %v580 = vand.u32 %v42, 4294901760
  %581 = vmatprep.subr.mxu0 %v580
  %v582 = vand.u32 %v41, 4294901760
  %583 = vmatpush1.msra.mxu0 %v582
  %v584 = vand.u32 %v40, 4294901760
  %585 = vmatprep.subr.mxu0 %v584
  %v586 = vand.u32 %v39, 4294901760
  %587 = vmatpush1.msra.mxu0 %v586
  %v588 = vand.u32 %v38, 4294901760
  %589 = vmatprep.subr.mxu0 %v588
  %v590 = vand.u32 %v37, 4294901760
  %591 = vmatpush1.msra.mxu0 %v590
  %v592 = vand.u32 %v36, 4294901760
  %593 = vmatprep.subr.mxu0 %v592
  %v594 = vand.u32 %v35, 4294901760
  %595 = vmatpush1.msra.mxu0 %v594
  %v596 = vand.u32 %v34, 4294901760
  %597 = vmatprep.subr.mxu0 %v596
  %v598 = vand.u32 %v33, 4294901760
  %599 = vmatpush1.msra.mxu0 %v598
  %v600 = vand.u32 %v32, 4294901760
  %601 = vmatprep.subr.mxu0 %v600
  %v602 = vand.u32 %v31, 4294901760
  %603 = vmatpush1.msra.mxu0 %v602
  %v604 = vand.u32 %v30, 4294901760
  %605 = vmatprep.subr.mxu0 %v604
  %v606 = vand.u32 %v29, 4294901760
  %607 = vmatpush1.msra.mxu0 %v606
  %v608 = vand.u32 %v28, 4294901760
  %609 = vmatprep.subr.mxu0 %v608
  %v610 = vand.u32 %v27, 4294901760
  %611 = vmatpush1.msra.mxu0 %v610
  %612 = vmatprep.subr.mxu0 0.0
  %613 = vmatpush2.msra.mxu0 0.0
  %614 = vmatprep.subr.mxu0 0.0
  %615 = vmatpush2.msra.mxu0 0.0
  %616 = vmatprep.subr.mxu0 0.0
  %617 = vmatpush2.msra.mxu0 0.0
  %618 = vmatprep.subr.mxu0 0.0
  %619 = vmatpush2.msra.mxu0 0.0
  %620 = vmatprep.subr.mxu0 0.0
  %621 = vmatpush2.msra.mxu0 0.0
  %622 = vmatprep.subr.mxu0 0.0
  %623 = vmatpush2.msra.mxu0 0.0
  %624 = vmatprep.subr.mxu0 0.0
  %625 = vmatpush2.msra.mxu0 0.0
  %626 = vmatprep.subr.mxu0 0.0
  %627 = vmatpush2.msra.mxu0 0.0
  %628 = vmatprep.subr.mxu0 0.0
  %629 = vmatpush2.msra.mxu0 0.0
  %630 = vmatprep.subr.mxu0 0.0
  %631 = vmatpush2.msra.mxu0 0.0
  %632 = vmatprep.subr.mxu0 0.0
  %633 = vmatpush2.msra.mxu0 0.0
  %634 = vmatprep.subr.mxu0 0.0
  %635 = vmatpush2.msra.mxu0 0.0
  %636 = vmatprep.subr.mxu0 0.0
  %637 = vmatpush2.msra.mxu0 0.0
  %638 = vmatprep.subr.mxu0 0.0
  %639 = vmatpush2.msra.mxu0 0.0
  %640 = vmatprep.subr.mxu0 0.0
  %641 = vmatpush2.msra.mxu0 0.0
  %642 = vmatprep.subr.mxu0 0.0
  %643 = vmatpush2.msra.mxu0 0.0
  %644 = vmatprep.mubr.f32.mxu0 0.0
  %v645 = vand.u32 %v26, 4294901760
  %v646 = vsub.f32 %v26, %v645
  %v647 = vand.u32 %v646, 4294901760
  %648 = vmatmul.mubr.f32.gmra.mxu0 %v647
  %v649 = vpop.f32.mrf.mxu0
  %v650 = vadd.f32 %v544, %v649
  %v651 = vpop.f32.mrf.mxu0
  %v652 = vadd.f32 %v546, %v651
  %653 = vdwg.mxu0
  %v654 = vand.u32 %v58, 4294901760
  %v655 = vsub.f32 %v58, %v654
  %v656 = vand.u32 %v655, 4294901760
  %657 = vmatprep.subr.mxu0 %v656
  %v658 = vand.u32 %v57, 4294901760
  %v659 = vsub.f32 %v57, %v658
  %v660 = vand.u32 %v659, 4294901760
  %661 = vmatpush1.msra.mxu0 %v660
  %v662 = vand.u32 %v56, 4294901760
  %v663 = vsub.f32 %v56, %v662
  %v664 = vand.u32 %v663, 4294901760
  %665 = vmatprep.subr.mxu0 %v664
  %v666 = vand.u32 %v55, 4294901760
  %v667 = vsub.f32 %v55, %v666
  %v668 = vand.u32 %v667, 4294901760
  %669 = vmatpush1.msra.mxu0 %v668
  %v670 = vand.u32 %v54, 4294901760
  %v671 = vsub.f32 %v54, %v670
  %v672 = vand.u32 %v671, 4294901760
  %673 = vmatprep.subr.mxu0 %v672
  %v674 = vand.u32 %v53, 4294901760
  %v675 = vsub.f32 %v53, %v674
  %v676 = vand.u32 %v675, 4294901760
  %677 = vmatpush1.msra.mxu0 %v676
  %v678 = vand.u32 %v52, 4294901760
  %v679 = vsub.f32 %v52, %v678
  %v680 = vand.u32 %v679, 4294901760
  %681 = vmatprep.subr.mxu0 %v680
  %v682 = vand.u32 %v51, 4294901760
  %v683 = vsub.f32 %v51, %v682
  %v684 = vand.u32 %v683, 4294901760
  %685 = vmatpush1.msra.mxu0 %v684
  %v686 = vand.u32 %v50, 4294901760
  %v687 = vsub.f32 %v50, %v686
  %v688 = vand.u32 %v687, 4294901760
  %689 = vmatprep.subr.mxu0 %v688
  %v690 = vand.u32 %v49, 4294901760
  %v691 = vsub.f32 %v49, %v690
  %v692 = vand.u32 %v691, 4294901760
  %693 = vmatpush1.msra.mxu0 %v692
  %v694 = vand.u32 %v48, 4294901760
  %v695 = vsub.f32 %v48, %v694
  %v696 = vand.u32 %v695, 4294901760
  %697 = vmatprep.subr.mxu0 %v696
  %v698 = vand.u32 %v47, 4294901760
  %v699 = vsub.f32 %v47, %v698
  %v700 = vand.u32 %v699, 4294901760
  %701 = vmatpush1.msra.mxu0 %v700
  %v702 = vand.u32 %v46, 4294901760
  %v703 = vsub.f32 %v46, %v702
  %v704 = vand.u32 %v703, 4294901760
  %705 = vmatprep.subr.mxu0 %v704
  %v706 = vand.u32 %v45, 4294901760
  %v707 = vsub.f32 %v45, %v706
  %v708 = vand.u32 %v707, 4294901760
  %709 = vmatpush1.msra.mxu0 %v708
  %v710 = vand.u32 %v44, 4294901760
  %v711 = vsub.f32 %v44, %v710
  %v712 = vand.u32 %v711, 4294901760
  %713 = vmatprep.subr.mxu0 %v712
  %v714 = vand.u32 %v43, 4294901760
  %v715 = vsub.f32 %v43, %v714
  %v716 = vand.u32 %v715, 4294901760
  %717 = vmatpush1.msra.mxu0 %v716
  %v718 = vand.u32 %v42, 4294901760
  %v719 = vsub.f32 %v42, %v718
  %v720 = vand.u32 %v719, 4294901760
  %721 = vmatprep.subr.mxu0 %v720
  %v722 = vand.u32 %v41, 4294901760
  %v723 = vsub.f32 %v41, %v722
  %v724 = vand.u32 %v723, 4294901760
  %725 = vmatpush1.msra.mxu0 %v724
  %v726 = vand.u32 %v40, 4294901760
  %v727 = vsub.f32 %v40, %v726
  %v728 = vand.u32 %v727, 4294901760
  %729 = vmatprep.subr.mxu0 %v728
  %v730 = vand.u32 %v39, 4294901760
  %v731 = vsub.f32 %v39, %v730
  %v732 = vand.u32 %v731, 4294901760
  %733 = vmatpush1.msra.mxu0 %v732
  %v734 = vand.u32 %v38, 4294901760
  %v735 = vsub.f32 %v38, %v734
  %v736 = vand.u32 %v735, 4294901760
  %737 = vmatprep.subr.mxu0 %v736
  %v738 = vand.u32 %v37, 4294901760
  %v739 = vsub.f32 %v37, %v738
  %v740 = vand.u32 %v739, 4294901760
  %741 = vmatpush1.msra.mxu0 %v740
  %v742 = vand.u32 %v36, 4294901760
  %v743 = vsub.f32 %v36, %v742
  %v744 = vand.u32 %v743, 4294901760
  %745 = vmatprep.subr.mxu0 %v744
  %v746 = vand.u32 %v35, 4294901760
  %v747 = vsub.f32 %v35, %v746
  %v748 = vand.u32 %v747, 4294901760
  %749 = vmatpush1.msra.mxu0 %v748
  %v750 = vand.u32 %v34, 4294901760
  %v751 = vsub.f32 %v34, %v750
  %v752 = vand.u32 %v751, 4294901760
  %753 = vmatprep.subr.mxu0 %v752
  %v754 = vand.u32 %v33, 4294901760
  %v755 = vsub.f32 %v33, %v754
  %v756 = vand.u32 %v755, 4294901760
  %757 = vmatpush1.msra.mxu0 %v756
  %v758 = vand.u32 %v32, 4294901760
  %v759 = vsub.f32 %v32, %v758
  %v760 = vand.u32 %v759, 4294901760
  %761 = vmatprep.subr.mxu0 %v760
  %v762 = vand.u32 %v31, 4294901760
  %v763 = vsub.f32 %v31, %v762
  %v764 = vand.u32 %v763, 4294901760
  %765 = vmatpush1.msra.mxu0 %v764
  %v766 = vand.u32 %v30, 4294901760
  %v767 = vsub.f32 %v30, %v766
  %v768 = vand.u32 %v767, 4294901760
  %769 = vmatprep.subr.mxu0 %v768
  %v770 = vand.u32 %v29, 4294901760
  %v771 = vsub.f32 %v29, %v770
  %v772 = vand.u32 %v771, 4294901760
  %773 = vmatpush1.msra.mxu0 %v772
  %v774 = vand.u32 %v28, 4294901760
  %v775 = vsub.f32 %v28, %v774
  %v776 = vand.u32 %v775, 4294901760
  %777 = vmatprep.subr.mxu0 %v776
  %v778 = vand.u32 %v27, 4294901760
  %v779 = vsub.f32 %v27, %v778
  %v780 = vand.u32 %v779, 4294901760
  %781 = vmatpush1.msra.mxu0 %v780
  %782 = vmatprep.subr.mxu0 0.0
  %783 = vmatpush2.msra.mxu0 0.0
  %784 = vmatprep.subr.mxu0 0.0
  %785 = vmatpush2.msra.mxu0 0.0
  %786 = vmatprep.subr.mxu0 0.0
  %787 = vmatpush2.msra.mxu0 0.0
  %788 = vmatprep.subr.mxu0 0.0
  %789 = vmatpush2.msra.mxu0 0.0
  %790 = vmatprep.subr.mxu0 0.0
  %791 = vmatpush2.msra.mxu0 0.0
  %792 = vmatprep.subr.mxu0 0.0
  %793 = vmatpush2.msra.mxu0 0.0
  %794 = vmatprep.subr.mxu0 0.0
  %795 = vmatpush2.msra.mxu0 0.0
  %796 = vmatprep.subr.mxu0 0.0
  %797 = vmatpush2.msra.mxu0 0.0
  %798 = vmatprep.subr.mxu0 0.0
  %799 = vmatpush2.msra.mxu0 0.0
  %800 = vmatprep.subr.mxu0 0.0
  %801 = vmatpush2.msra.mxu0 0.0
  %802 = vmatprep.subr.mxu0 0.0
  %803 = vmatpush2.msra.mxu0 0.0
  %804 = vmatprep.subr.mxu0 0.0
  %805 = vmatpush2.msra.mxu0 0.0
  %806 = vmatprep.subr.mxu0 0.0
  %807 = vmatpush2.msra.mxu0 0.0
  %808 = vmatprep.subr.mxu0 0.0
  %809 = vmatpush2.msra.mxu0 0.0
  %810 = vmatprep.subr.mxu0 0.0
  %811 = vmatpush2.msra.mxu0 0.0
  %812 = vmatprep.subr.mxu0 0.0
  %813 = vmatpush2.msra.mxu0 0.0
  %814 = vmatprep.mubr.f32.mxu0 0.0
  %v815 = vand.u32 %v26, 4294901760
  %816 = vmatmul.mubr.f32.gmra.mxu0 %v815
  %v817 = vpop.f32.mrf.mxu0
  %v818 = vadd.f32 %v650, %v817
  %v819 = vpop.f32.mrf.mxu0
  %v820 = vadd.f32 %v652, %v819
  %821 = vdwg.mxu0
  %v822 = vand.u32 %v58, 4294901760
  %823 = vmatprep.subr.mxu0 %v822
  %v824 = vand.u32 %v57, 4294901760
  %825 = vmatpush1.msra.mxu0 %v824
  %v826 = vand.u32 %v56, 4294901760
  %827 = vmatprep.subr.mxu0 %v826
  %v828 = vand.u32 %v55, 4294901760
  %829 = vmatpush1.msra.mxu0 %v828
  %v830 = vand.u32 %v54, 4294901760
  %831 = vmatprep.subr.mxu0 %v830
  %v832 = vand.u32 %v53, 4294901760
  %833 = vmatpush1.msra.mxu0 %v832
  %v834 = vand.u32 %v52, 4294901760
  %835 = vmatprep.subr.mxu0 %v834
  %v836 = vand.u32 %v51, 4294901760
  %837 = vmatpush1.msra.mxu0 %v836
  %v838 = vand.u32 %v50, 4294901760
  %839 = vmatprep.subr.mxu0 %v838
  %v840 = vand.u32 %v49, 4294901760
  %841 = vmatpush1.msra.mxu0 %v840
  %v842 = vand.u32 %v48, 4294901760
  %843 = vmatprep.subr.mxu0 %v842
  %v844 = vand.u32 %v47, 4294901760
  %845 = vmatpush1.msra.mxu0 %v844
  %v846 = vand.u32 %v46, 4294901760
  %847 = vmatprep.subr.mxu0 %v846
  %v848 = vand.u32 %v45, 4294901760
  %849 = vmatpush1.msra.mxu0 %v848
  %v850 = vand.u32 %v44, 4294901760
  %851 = vmatprep.subr.mxu0 %v850
  %v852 = vand.u32 %v43, 4294901760
  %853 = vmatpush1.msra.mxu0 %v852
  %v854 = vand.u32 %v42, 4294901760
  %855 = vmatprep.subr.mxu0 %v854
  %v856 = vand.u32 %v41, 4294901760
  %857 = vmatpush1.msra.mxu0 %v856
  %v858 = vand.u32 %v40, 4294901760
  %859 = vmatprep.subr.mxu0 %v858
  %v860 = vand.u32 %v39, 4294901760
  %861 = vmatpush1.msra.mxu0 %v860
  %v862 = vand.u32 %v38, 4294901760
  %863 = vmatprep.subr.mxu0 %v862
  %v864 = vand.u32 %v37, 4294901760
  %865 = vmatpush1.msra.mxu0 %v864
  %v866 = vand.u32 %v36, 4294901760
  %867 = vmatprep.subr.mxu0 %v866
  %v868 = vand.u32 %v35, 4294901760
  %869 = vmatpush1.msra.mxu0 %v868
  %v870 = vand.u32 %v34, 4294901760
  %871 = vmatprep.subr.mxu0 %v870
  %v872 = vand.u32 %v33, 4294901760
  %873 = vmatpush1.msra.mxu0 %v872
  %v874 = vand.u32 %v32, 4294901760
  %875 = vmatprep.subr.mxu0 %v874
  %v876 = vand.u32 %v31, 4294901760
  %877 = vmatpush1.msra.mxu0 %v876
  %v878 = vand.u32 %v30, 4294901760
  %879 = vmatprep.subr.mxu0 %v878
  %v880 = vand.u32 %v29, 4294901760
  %881 = vmatpush1.msra.mxu0 %v880
  %v882 = vand.u32 %v28, 4294901760
  %883 = vmatprep.subr.mxu0 %v882
  %v884 = vand.u32 %v27, 4294901760
  %885 = vmatpush1.msra.mxu0 %v884
  %886 = vmatprep.subr.mxu0 0.0
  %887 = vmatpush2.msra.mxu0 0.0
  %888 = vmatprep.subr.mxu0 0.0
  %889 = vmatpush2.msra.mxu0 0.0
  %890 = vmatprep.subr.mxu0 0.0
  %891 = vmatpush2.msra.mxu0 0.0
  %892 = vmatprep.subr.mxu0 0.0
  %893 = vmatpush2.msra.mxu0 0.0
  %894 = vmatprep.subr.mxu0 0.0
  %895 = vmatpush2.msra.mxu0 0.0
  %896 = vmatprep.subr.mxu0 0.0
  %897 = vmatpush2.msra.mxu0 0.0
  %898 = vmatprep.subr.mxu0 0.0
  %899 = vmatpush2.msra.mxu0 0.0
  %900 = vmatprep.subr.mxu0 0.0
  %901 = vmatpush2.msra.mxu0 0.0
  %902 = vmatprep.subr.mxu0 0.0
  %903 = vmatpush2.msra.mxu0 0.0
  %904 = vmatprep.subr.mxu0 0.0
  %905 = vmatpush2.msra.mxu0 0.0
  %906 = vmatprep.subr.mxu0 0.0
  %907 = vmatpush2.msra.mxu0 0.0
  %908 = vmatprep.subr.mxu0 0.0
  %909 = vmatpush2.msra.mxu0 0.0
  %910 = vmatprep.subr.mxu0 0.0
  %911 = vmatpush2.msra.mxu0 0.0
  %912 = vmatprep.subr.mxu0 0.0
  %913 = vmatpush2.msra.mxu0 0.0
  %914 = vmatprep.subr.mxu0 0.0
  %915 = vmatpush2.msra.mxu0 0.0
  %916 = vmatprep.subr.mxu0 0.0
  %917 = vmatpush2.msra.mxu0 0.0
  %918 = vmatprep.mubr.f32.mxu0 0.0
  %v919 = vand.u32 %v26, 4294901760
  %920 = vmatmul.mubr.f32.gmra.mxu0 %v919
  %v921 = vpop.f32.mrf.mxu0
  %v922 = vadd.f32 %v818, %v921
  %v923 = vpop.f32.mrf.mxu0
  %v924 = vadd.f32 %v820, %v923
  %925 = vdwg.mxu0
  %v926 = vmax.f32 %v922, 0.0
  %v927 = vmax.f32 %v924, 0.0
  %v928 = vld [vmem:[%s3] sm:$0xff]
  %v929 = vld [vmem:[%s3 + $0x8] sm:$0xff]
  %v930 = vld [vmem:[%s3 + $0x10] sm:$0xff]
  %v931 = vld [vmem:[%s3 + $0x18] sm:$0xff]
  %v932 = vld [vmem:[%s3 + $0x20] sm:$0xff]
  %v933 = vld [vmem:[%s3 + $0x28] sm:$0xff]
  %v934 = vld [vmem:[%s3 + $0x30] sm:$0xff]
  %v935 = vld [vmem:[%s3 + $0x38] sm:$0xff]
  %v936 = vld [vmem:[%s3 + $0x40] sm:$0xff]
  %v937 = vld [vmem:[%s3 + $0x48] sm:$0xff]
  %v938 = vld [vmem:[%s3 + $0x50] sm:$0xff]
  %v939 = vld [vmem:[%s3 + $0x58] sm:$0xff]
  %v940 = vld [vmem:[%s3 + $0x60] sm:$0xff]
  %v941 = vld [vmem:[%s3 + $0x68] sm:$0xff]
  %v942 = vld [vmem:[%s3 + $0x70] sm:$0xff]
  %v943 = vld [vmem:[%s3 + $0x78] sm:$0xff]
  %v944 = vld [vmem:[%s3 + $0x80] sm:$0xff]
  %v945 = vld [vmem:[%s3 + $0x88] sm:$0xff]
  %v946 = vld [vmem:[%s3 + $0x90] sm:$0xff]
  %v947 = vld [vmem:[%s3 + $0x98] sm:$0xff]
  %v948 = vld [vmem:[%s3 + $0xa0] sm:$0xff]
  %v949 = vld [vmem:[%s3 + $0xa8] sm:$0xff]
  %v950 = vld [vmem:[%s3 + $0xb0] sm:$0xff]
  %v951 = vld [vmem:[%s3 + $0xb8] sm:$0xff]
  %v952 = vld [vmem:[%s3 + $0xc0] sm:$0xff]
  %v953 = vld [vmem:[%s3 + $0xc8] sm:$0xff]
  %v954 = vld [vmem:[%s3 + $0xd0] sm:$0xff]
  %v955 = vld [vmem:[%s3 + $0xd8] sm:$0xff]
  %v956 = vld [vmem:[%s3 + $0xe0] sm:$0xff]
  %v957 = vld [vmem:[%s3 + $0xe8] sm:$0xff]
  %v958 = vld [vmem:[%s3 + $0xf0] sm:$0xff]
  %v959 = vld [vmem:[%s3 + $0xf8] sm:$0xff]
  %v960 = vld [vmem:[%s4] sm:$0x1]
  %v962 = vlaneseq
  %v963 = vshrl.u32 %v962, 7
  %v964 = vsub.s32 0, %v963
  %v965 = vrot.slane %v960, %v964
  %967 = vmatprep.subr.mxu0 0.0
  %v968 = vand.u32 %v943, 4294901760
  %969 = vmatpush1.msra.mxu0 %v968
  %970 = vmatprep.subr.mxu0 0.0
  %v971 = vand.u32 %v942, 4294901760
  %972 = vmatpush1.msra.mxu0 %v971
  %973 = vmatprep.subr.mxu0 0.0
  %v974 = vand.u32 %v941, 4294901760
  %975 = vmatpush1.msra.mxu0 %v974
  %976 = vmatprep.subr.mxu0 0.0
  %v977 = vand.u32 %v940, 4294901760
  %978 = vmatpush1.msra.mxu0 %v977
  %979 = vmatprep.subr.mxu0 0.0
  %v980 = vand.u32 %v939, 4294901760
  %981 = vmatpush1.msra.mxu0 %v980
  %982 = vmatprep.subr.mxu0 0.0
  %v983 = vand.u32 %v938, 4294901760
  %984 = vmatpush1.msra.mxu0 %v983
  %985 = vmatprep.subr.mxu0 0.0
  %v986 = vand.u32 %v937, 4294901760
  %987 = vmatpush1.msra.mxu0 %v986
  %988 = vmatprep.subr.mxu0 0.0
  %v989 = vand.u32 %v936, 4294901760
  %990 = vmatpush1.msra.mxu0 %v989
  %991 = vmatprep.subr.mxu0 0.0
  %v992 = vand.u32 %v935, 4294901760
  %993 = vmatpush1.msra.mxu0 %v992
  %994 = vmatprep.subr.mxu0 0.0
  %v995 = vand.u32 %v934, 4294901760
  %996 = vmatpush1.msra.mxu0 %v995
  %997 = vmatprep.subr.mxu0 0.0
  %v998 = vand.u32 %v933, 4294901760
  %999 = vmatpush1.msra.mxu0 %v998
  %1000 = vmatprep.subr.mxu0 0.0
  %v1001 = vand.u32 %v932, 4294901760
  %1002 = vmatpush1.msra.mxu0 %v1001
  %1003 = vmatprep.subr.mxu0 0.0
  %v1004 = vand.u32 %v931, 4294901760
  %1005 = vmatpush1.msra.mxu0 %v1004
  %1006 = vmatprep.subr.mxu0 0.0
  %v1007 = vand.u32 %v930, 4294901760
  %1008 = vmatpush1.msra.mxu0 %v1007
  %1009 = vmatprep.subr.mxu0 0.0
  %v1010 = vand.u32 %v929, 4294901760
  %1011 = vmatpush1.msra.mxu0 %v1010
  %1012 = vmatprep.subr.mxu0 0.0
  %v1013 = vand.u32 %v928, 4294901760
  %1014 = vmatpush1.msra.mxu0 %v1013
  %1015 = vmatprep.subr.mxu0 0.0
  %v1016 = vand.u32 %v959, 4294901760
  %1017 = vmatpush2.msra.mxu0 %v1016
  %1018 = vmatprep.subr.mxu0 0.0
  %v1019 = vand.u32 %v958, 4294901760
  %1020 = vmatpush2.msra.mxu0 %v1019
  %1021 = vmatprep.subr.mxu0 0.0
  %v1022 = vand.u32 %v957, 4294901760
  %1023 = vmatpush2.msra.mxu0 %v1022
  %1024 = vmatprep.subr.mxu0 0.0
  %v1025 = vand.u32 %v956, 4294901760
  %1026 = vmatpush2.msra.mxu0 %v1025
  %1027 = vmatprep.subr.mxu0 0.0
  %v1028 = vand.u32 %v955, 4294901760
  %1029 = vmatpush2.msra.mxu0 %v1028
  %1030 = vmatprep.subr.mxu0 0.0
  %v1031 = vand.u32 %v954, 4294901760
  %1032 = vmatpush2.msra.mxu0 %v1031
  %1033 = vmatprep.subr.mxu0 0.0
  %v1034 = vand.u32 %v953, 4294901760
  %1035 = vmatpush2.msra.mxu0 %v1034
  %1036 = vmatprep.subr.mxu0 0.0
  %v1037 = vand.u32 %v952, 4294901760
  %1038 = vmatpush2.msra.mxu0 %v1037
  %1039 = vmatprep.subr.mxu0 0.0
  %v1040 = vand.u32 %v951, 4294901760
  %1041 = vmatpush2.msra.mxu0 %v1040
  %1042 = vmatprep.subr.mxu0 0.0
  %v1043 = vand.u32 %v950, 4294901760
  %1044 = vmatpush2.msra.mxu0 %v1043
  %1045 = vmatprep.subr.mxu0 0.0
  %v1046 = vand.u32 %v949, 4294901760
  %1047 = vmatpush2.msra.mxu0 %v1046
  %1048 = vmatprep.subr.mxu0 0.0
  %v1049 = vand.u32 %v948, 4294901760
  %1050 = vmatpush2.msra.mxu0 %v1049
  %1051 = vmatprep.subr.mxu0 0.0
  %v1052 = vand.u32 %v947, 4294901760
  %1053 = vmatpush2.msra.mxu0 %v1052
  %1054 = vmatprep.subr.mxu0 0.0
  %v1055 = vand.u32 %v946, 4294901760
  %1056 = vmatpush2.msra.mxu0 %v1055
  %1057 = vmatprep.subr.mxu0 0.0
  %v1058 = vand.u32 %v945, 4294901760
  %1059 = vmatpush2.msra.mxu0 %v1058
  %1060 = vmatprep.subr.mxu0 0.0
  %v1061 = vand.u32 %v944, 4294901760
  %1062 = vmatpush2.msra.mxu0 %v1061
  %v1063 = vand.u32 %v927, 4294901760
  %v1064 = vsub.f32 %v927, %v1063
  %v1065 = vand.u32 %v1064, 4294901760
  %v1066 = vsub.f32 %v1064, %v1065
  %v1067 = vand.u32 %v1066, 4294901760
  %1068 = vmatprep.mubr.f32.mxu0 %v1067
  %v1069 = vand.u32 %v926, 4294901760
  %v1070 = vsub.f32 %v926, %v1069
  %v1071 = vand.u32 %v1070, 4294901760
  %v1072 = vsub.f32 %v1070, %v1071
  %v1073 = vand.u32 %v1072, 4294901760
  %1074 = vmatmul.mubr.f32.gmra.mxu0 %v1073
  %v1075 = vpop.f32.mrf.mxu0
  %v1076 = vadd.f32 %v965, %v1075
  %v1077 = vpop.f32.mrf.mxu0
  %1078 = vdwg.mxu0
  %1079 = vmatprep.subr.mxu0 0.0
  %v1080 = vand.u32 %v943, 4294901760
  %v1081 = vsub.f32 %v943, %v1080
  %v1082 = vand.u32 %v1081, 4294901760
  %v1083 = vsub.f32 %v1081, %v1082
  %v1084 = vand.u32 %v1083, 4294901760
  %1085 = vmatpush1.msra.mxu0 %v1084
  %1086 = vmatprep.subr.mxu0 0.0
  %v1087 = vand.u32 %v942, 4294901760
  %v1088 = vsub.f32 %v942, %v1087
  %v1089 = vand.u32 %v1088, 4294901760
  %v1090 = vsub.f32 %v1088, %v1089
  %v1091 = vand.u32 %v1090, 4294901760
  %1092 = vmatpush1.msra.mxu0 %v1091
  %1093 = vmatprep.subr.mxu0 0.0
  %v1094 = vand.u32 %v941, 4294901760
  %v1095 = vsub.f32 %v941, %v1094
  %v1096 = vand.u32 %v1095, 4294901760
  %v1097 = vsub.f32 %v1095, %v1096
  %v1098 = vand.u32 %v1097, 4294901760
  %1099 = vmatpush1.msra.mxu0 %v1098
  %1100 = vmatprep.subr.mxu0 0.0
  %v1101 = vand.u32 %v940, 4294901760
  %v1102 = vsub.f32 %v940, %v1101
  %v1103 = vand.u32 %v1102, 4294901760
  %v1104 = vsub.f32 %v1102, %v1103
  %v1105 = vand.u32 %v1104, 4294901760
  %1106 = vmatpush1.msra.mxu0 %v1105
  %1107 = vmatprep.subr.mxu0 0.0
  %v1108 = vand.u32 %v939, 4294901760
  %v1109 = vsub.f32 %v939, %v1108
  %v1110 = vand.u32 %v1109, 4294901760
  %v1111 = vsub.f32 %v1109, %v1110
  %v1112 = vand.u32 %v1111, 4294901760
  %1113 = vmatpush1.msra.mxu0 %v1112
  %1114 = vmatprep.subr.mxu0 0.0
  %v1115 = vand.u32 %v938, 4294901760
  %v1116 = vsub.f32 %v938, %v1115
  %v1117 = vand.u32 %v1116, 4294901760
  %v1118 = vsub.f32 %v1116, %v1117
  %v1119 = vand.u32 %v1118, 4294901760
  %1120 = vmatpush1.msra.mxu0 %v1119
  %1121 = vmatprep.subr.mxu0 0.0
  %v1122 = vand.u32 %v937, 4294901760
  %v1123 = vsub.f32 %v937, %v1122
  %v1124 = vand.u32 %v1123, 4294901760
  %v1125 = vsub.f32 %v1123, %v1124
  %v1126 = vand.u32 %v1125, 4294901760
  %1127 = vmatpush1.msra.mxu0 %v1126
  %1128 = vmatprep.subr.mxu0 0.0
  %v1129 = vand.u32 %v936, 4294901760
  %v1130 = vsub.f32 %v936, %v1129
  %v1131 = vand.u32 %v1130, 4294901760
  %v1132 = vsub.f32 %v1130, %v1131
  %v1133 = vand.u32 %v1132, 4294901760
  %1134 = vmatpush1.msra.mxu0 %v1133
  %1135 = vmatprep.subr.mxu0 0.0
  %v1136 = vand.u32 %v935, 4294901760
  %v1137 = vsub.f32 %v935, %v1136
  %v1138 = vand.u32 %v1137, 4294901760
  %v1139 = vsub.f32 %v1137, %v1138
  %v1140 = vand.u32 %v1139, 4294901760
  %1141 = vmatpush1.msra.mxu0 %v1140
  %1142 = vmatprep.subr.mxu0 0.0
  %v1143 = vand.u32 %v934, 4294901760
  %v1144 = vsub.f32 %v934, %v1143
  %v1145 = vand.u32 %v1144, 4294901760
  %v1146 = vsub.f32 %v1144, %v1145
  %v1147 = vand.u32 %v1146, 4294901760
  %1148 = vmatpush1.msra.mxu0 %v1147
  %1149 = vmatprep.subr.mxu0 0.0
  %v1150 = vand.u32 %v933, 4294901760
  %v1151 = vsub.f32 %v933, %v1150
  %v1152 = vand.u32 %v1151, 4294901760
  %v1153 = vsub.f32 %v1151, %v1152
  %v1154 = vand.u32 %v1153, 4294901760
  %1155 = vmatpush1.msra.mxu0 %v1154
  %1156 = vmatprep.subr.mxu0 0.0
  %v1157 = vand.u32 %v932, 4294901760
  %v1158 = vsub.f32 %v932, %v1157
  %v1159 = vand.u32 %v1158, 4294901760
  %v1160 = vsub.f32 %v1158, %v1159
  %v1161 = vand.u32 %v1160, 4294901760
  %1162 = vmatpush1.msra.mxu0 %v1161
  %1163 = vmatprep.subr.mxu0 0.0
  %v1164 = vand.u32 %v931, 4294901760
  %v1165 = vsub.f32 %v931, %v1164
  %v1166 = vand.u32 %v1165, 4294901760
  %v1167 = vsub.f32 %v1165, %v1166
  %v1168 = vand.u32 %v1167, 4294901760
  %1169 = vmatpush1.msra.mxu0 %v1168
  %1170 = vmatprep.subr.mxu0 0.0
  %v1171 = vand.u32 %v930, 4294901760
  %v1172 = vsub.f32 %v930, %v1171
  %v1173 = vand.u32 %v1172, 4294901760
  %v1174 = vsub.f32 %v1172, %v1173
  %v1175 = vand.u32 %v1174, 4294901760
  %1176 = vmatpush1.msra.mxu0 %v1175
  %1177 = vmatprep.subr.mxu0 0.0
  %v1178 = vand.u32 %v929, 4294901760
  %v1179 = vsub.f32 %v929, %v1178
  %v1180 = vand.u32 %v1179, 4294901760
  %v1181 = vsub.f32 %v1179, %v1180
  %v1182 = vand.u32 %v1181, 4294901760
  %1183 = vmatpush1.msra.mxu0 %v1182
  %1184 = vmatprep.subr.mxu0 0.0
  %v1185 = vand.u32 %v928, 4294901760
  %v1186 = vsub.f32 %v928, %v1185
  %v1187 = vand.u32 %v1186, 4294901760
  %v1188 = vsub.f32 %v1186, %v1187
  %v1189 = vand.u32 %v1188, 4294901760
  %1190 = vmatpush1.msra.mxu0 %v1189
  %1191 = vmatprep.subr.mxu0 0.0
  %v1192 = vand.u32 %v959, 4294901760
  %v1193 = vsub.f32 %v959, %v1192
  %v1194 = vand.u32 %v1193, 4294901760
  %v1195 = vsub.f32 %v1193, %v1194
  %v1196 = vand.u32 %v1195, 4294901760
  %1197 = vmatpush2.msra.mxu0 %v1196
  %1198 = vmatprep.subr.mxu0 0.0
  %v1199 = vand.u32 %v958, 4294901760
  %v1200 = vsub.f32 %v958, %v1199
  %v1201 = vand.u32 %v1200, 4294901760
  %v1202 = vsub.f32 %v1200, %v1201
  %v1203 = vand.u32 %v1202, 4294901760
  %1204 = vmatpush2.msra.mxu0 %v1203
  %1205 = vmatprep.subr.mxu0 0.0
  %v1206 = vand.u32 %v957, 4294901760
  %v1207 = vsub.f32 %v957, %v1206
  %v1208 = vand.u32 %v1207, 4294901760
  %v1209 = vsub.f32 %v1207, %v1208
  %v1210 = vand.u32 %v1209, 4294901760
  %1211 = vmatpush2.msra.mxu0 %v1210
  %1212 = vmatprep.subr.mxu0 0.0
  %v1213 = vand.u32 %v956, 4294901760
  %v1214 = vsub.f32 %v956, %v1213
  %v1215 = vand.u32 %v1214, 4294901760
  %v1216 = vsub.f32 %v1214, %v1215
  %v1217 = vand.u32 %v1216, 4294901760
  %1218 = vmatpush2.msra.mxu0 %v1217
  %1219 = vmatprep.subr.mxu0 0.0
  %v1220 = vand.u32 %v955, 4294901760
  %v1221 = vsub.f32 %v955, %v1220
  %v1222 = vand.u32 %v1221, 4294901760
  %v1223 = vsub.f32 %v1221, %v1222
  %v1224 = vand.u32 %v1223, 4294901760
  %1225 = vmatpush2.msra.mxu0 %v1224
  %1226 = vmatprep.subr.mxu0 0.0
  %v1227 = vand.u32 %v954, 4294901760
  %v1228 = vsub.f32 %v954, %v1227
  %v1229 = vand.u32 %v1228, 4294901760
  %v1230 = vsub.f32 %v1228, %v1229
  %v1231 = vand.u32 %v1230, 4294901760
  %1232 = vmatpush2.msra.mxu0 %v1231
  %1233 = vmatprep.subr.mxu0 0.0
  %v1234 = vand.u32 %v953, 4294901760
  %v1235 = vsub.f32 %v953, %v1234
  %v1236 = vand.u32 %v1235, 4294901760
  %v1237 = vsub.f32 %v1235, %v1236
  %v1238 = vand.u32 %v1237, 4294901760
  %1239 = vmatpush2.msra.mxu0 %v1238
  %1240 = vmatprep.subr.mxu0 0.0
  %v1241 = vand.u32 %v952, 4294901760
  %v1242 = vsub.f32 %v952, %v1241
  %v1243 = vand.u32 %v1242, 4294901760
  %v1244 = vsub.f32 %v1242, %v1243
  %v1245 = vand.u32 %v1244, 4294901760
  %1246 = vmatpush2.msra.mxu0 %v1245
  %1247 = vmatprep.subr.mxu0 0.0
  %v1248 = vand.u32 %v951, 4294901760
  %v1249 = vsub.f32 %v951, %v1248
  %v1250 = vand.u32 %v1249, 4294901760
  %v1251 = vsub.f32 %v1249, %v1250
  %v1252 = vand.u32 %v1251, 4294901760
  %1253 = vmatpush2.msra.mxu0 %v1252
  %1254 = vmatprep.subr.mxu0 0.0
  %v1255 = vand.u32 %v950, 4294901760
  %v1256 = vsub.f32 %v950, %v1255
  %v1257 = vand.u32 %v1256, 4294901760
  %v1258 = vsub.f32 %v1256, %v1257
  %v1259 = vand.u32 %v1258, 4294901760
  %1260 = vmatpush2.msra.mxu0 %v1259
  %1261 = vmatprep.subr.mxu0 0.0
  %v1262 = vand.u32 %v949, 4294901760
  %v1263 = vsub.f32 %v949, %v1262
  %v1264 = vand.u32 %v1263, 4294901760
  %v1265 = vsub.f32 %v1263, %v1264
  %v1266 = vand.u32 %v1265, 4294901760
  %1267 = vmatpush2.msra.mxu0 %v1266
  %1268 = vmatprep.subr.mxu0 0.0
  %v1269 = vand.u32 %v948, 4294901760
  %v1270 = vsub.f32 %v948, %v1269
  %v1271 = vand.u32 %v1270, 4294901760
  %v1272 = vsub.f32 %v1270, %v1271
  %v1273 = vand.u32 %v1272, 4294901760
  %1274 = vmatpush2.msra.mxu0 %v1273
  %1275 = vmatprep.subr.mxu0 0.0
  %v1276 = vand.u32 %v947, 4294901760
  %v1277 = vsub.f32 %v947, %v1276
  %v1278 = vand.u32 %v1277, 4294901760
  %v1279 = vsub.f32 %v1277, %v1278
  %v1280 = vand.u32 %v1279, 4294901760
  %1281 = vmatpush2.msra.mxu0 %v1280
  %1282 = vmatprep.subr.mxu0 0.0
  %v1283 = vand.u32 %v946, 4294901760
  %v1284 = vsub.f32 %v946, %v1283
  %v1285 = vand.u32 %v1284, 4294901760
  %v1286 = vsub.f32 %v1284, %v1285
  %v1287 = vand.u32 %v1286, 4294901760
  %1288 = vmatpush2.msra.mxu0 %v1287
  %1289 = vmatprep.subr.mxu0 0.0
  %v1290 = vand.u32 %v945, 4294901760
  %v1291 = vsub.f32 %v945, %v1290
  %v1292 = vand.u32 %v1291, 4294901760
  %v1293 = vsub.f32 %v1291, %v1292
  %v1294 = vand.u32 %v1293, 4294901760
  %1295 = vmatpush2.msra.mxu0 %v1294
  %1296 = vmatprep.subr.mxu0 0.0
  %v1297 = vand.u32 %v944, 4294901760
  %v1298 = vsub.f32 %v944, %v1297
  %v1299 = vand.u32 %v1298, 4294901760
  %v1300 = vsub.f32 %v1298, %v1299
  %v1301 = vand.u32 %v1300, 4294901760
  %1302 = vmatpush2.msra.mxu0 %v1301
  %v1303 = vand.u32 %v927, 4294901760
  %1304 = vmatprep.mubr.f32.mxu0 %v1303
  %v1305 = vand.u32 %v926, 4294901760
  %1306 = vmatmul.mubr.f32.gmra.mxu0 %v1305
  %v1307 = vpop.f32.mrf.mxu0
  %v1308 = vadd.f32 %v1076, %v1307
  %v1309 = vpop.f32.mrf.mxu0
  %1310 = vdwg.mxu0
  %1311 = vmatprep.subr.mxu0 0.0
  %v1312 = vand.u32 %v943, 4294901760
  %v1313 = vsub.f32 %v943, %v1312
  %1314 = vmatpush1.msra.mxu0 %v1313
  %1315 = vmatprep.subr.mxu0 0.0
  %v1316 = vand.u32 %v942, 4294901760
  %v1317 = vsub.f32 %v942, %v1316
  %1318 = vmatpush1.msra.mxu0 %v1317
  %1319 = vmatprep.subr.mxu0 0.0
  %v1320 = vand.u32 %v941, 4294901760
  %v1321 = vsub.f32 %v941, %v1320
  %1322 = vmatpush1.msra.mxu0 %v1321
  %1323 = vmatprep.subr.mxu0 0.0
  %v1324 = vand.u32 %v940, 4294901760
  %v1325 = vsub.f32 %v940, %v1324
  %1326 = vmatpush1.msra.mxu0 %v1325
  %1327 = vmatprep.subr.mxu0 0.0
  %v1328 = vand.u32 %v939, 4294901760
  %v1329 = vsub.f32 %v939, %v1328
  %1330 = vmatpush1.msra.mxu0 %v1329
  %1331 = vmatprep.subr.mxu0 0.0
  %v1332 = vand.u32 %v938, 4294901760
  %v1333 = vsub.f32 %v938, %v1332
  %1334 = vmatpush1.msra.mxu0 %v1333
  %1335 = vmatprep.subr.mxu0 0.0
  %v1336 = vand.u32 %v937, 4294901760
  %v1337 = vsub.f32 %v937, %v1336
  %1338 = vmatpush1.msra.mxu0 %v1337
  %1339 = vmatprep.subr.mxu0 0.0
  %v1340 = vand.u32 %v936, 4294901760
  %v1341 = vsub.f32 %v936, %v1340
  %1342 = vmatpush1.msra.mxu0 %v1341
  %1343 = vmatprep.subr.mxu0 0.0
  %v1344 = vand.u32 %v935, 4294901760
  %v1345 = vsub.f32 %v935, %v1344
  %1346 = vmatpush1.msra.mxu0 %v1345
  %1347 = vmatprep.subr.mxu0 0.0
  %v1348 = vand.u32 %v934, 4294901760
  %v1349 = vsub.f32 %v934, %v1348
  %1350 = vmatpush1.msra.mxu0 %v1349
  %1351 = vmatprep.subr.mxu0 0.0
  %v1352 = vand.u32 %v933, 4294901760
  %v1353 = vsub.f32 %v933, %v1352
  %1354 = vmatpush1.msra.mxu0 %v1353
  %1355 = vmatprep.subr.mxu0 0.0
  %v1356 = vand.u32 %v932, 4294901760
  %v1357 = vsub.f32 %v932, %v1356
  %1358 = vmatpush1.msra.mxu0 %v1357
  %1359 = vmatprep.subr.mxu0 0.0
  %v1360 = vand.u32 %v931, 4294901760
  %v1361 = vsub.f32 %v931, %v1360
  %1362 = vmatpush1.msra.mxu0 %v1361
  %1363 = vmatprep.subr.mxu0 0.0
  %v1364 = vand.u32 %v930, 4294901760
  %v1365 = vsub.f32 %v930, %v1364
  %1366 = vmatpush1.msra.mxu0 %v1365
  %1367 = vmatprep.subr.mxu0 0.0
  %v1368 = vand.u32 %v929, 4294901760
  %v1369 = vsub.f32 %v929, %v1368
  %1370 = vmatpush1.msra.mxu0 %v1369
  %1371 = vmatprep.subr.mxu0 0.0
  %v1372 = vand.u32 %v928, 4294901760
  %v1373 = vsub.f32 %v928, %v1372
  %1374 = vmatpush1.msra.mxu0 %v1373
  %1375 = vmatprep.subr.mxu0 0.0
  %v1376 = vand.u32 %v959, 4294901760
  %v1377 = vsub.f32 %v959, %v1376
  %1378 = vmatpush2.msra.mxu0 %v1377
  %1379 = vmatprep.subr.mxu0 0.0
  %v1380 = vand.u32 %v958, 4294901760
  %v1381 = vsub.f32 %v958, %v1380
  %1382 = vmatpush2.msra.mxu0 %v1381
  %1383 = vmatprep.subr.mxu0 0.0
  %v1384 = vand.u32 %v957, 4294901760
  %v1385 = vsub.f32 %v957, %v1384
  %1386 = vmatpush2.msra.mxu0 %v1385
  %1387 = vmatprep.subr.mxu0 0.0
  %v1388 = vand.u32 %v956, 4294901760
  %v1389 = vsub.f32 %v956, %v1388
  %1390 = vmatpush2.msra.mxu0 %v1389
  %1391 = vmatprep.subr.mxu0 0.0
  %v1392 = vand.u32 %v955, 4294901760
  %v1393 = vsub.f32 %v955, %v1392
  %1394 = vmatpush2.msra.mxu0 %v1393
  %1395 = vmatprep.subr.mxu0 0.0
  %v1396 = vand.u32 %v954, 4294901760
  %v1397 = vsub.f32 %v954, %v1396
  %1398 = vmatpush2.msra.mxu0 %v1397
  %1399 = vmatprep.subr.mxu0 0.0
  %v1400 = vand.u32 %v953, 4294901760
  %v1401 = vsub.f32 %v953, %v1400
  %1402 = vmatpush2.msra.mxu0 %v1401
  %1403 = vmatprep.subr.mxu0 0.0
  %v1404 = vand.u32 %v952, 4294901760
  %v1405 = vsub.f32 %v952, %v1404
  %1406 = vmatpush2.msra.mxu0 %v1405
  %1407 = vmatprep.subr.mxu0 0.0
  %v1408 = vand.u32 %v951, 4294901760
  %v1409 = vsub.f32 %v951, %v1408
  %1410 = vmatpush2.msra.mxu0 %v1409
  %1411 = vmatprep.subr.mxu0 0.0
  %v1412 = vand.u32 %v950, 4294901760
  %v1413 = vsub.f32 %v950, %v1412
  %1414 = vmatpush2.msra.mxu0 %v1413
  %1415 = vmatprep.subr.mxu0 0.0
  %v1416 = vand.u32 %v949, 4294901760
  %v1417 = vsub.f32 %v949, %v1416
  %1418 = vmatpush2.msra.mxu0 %v1417
  %1419 = vmatprep.subr.mxu0 0.0
  %v1420 = vand.u32 %v948, 4294901760
  %v1421 = vsub.f32 %v948, %v1420
  %1422 = vmatpush2.msra.mxu0 %v1421
  %1423 = vmatprep.subr.mxu0 0.0
  %v1424 = vand.u32 %v947, 4294901760
  %v1425 = vsub.f32 %v947, %v1424
  %1426 = vmatpush2.msra.mxu0 %v1425
  %1427 = vmatprep.subr.mxu0 0.0
  %v1428 = vand.u32 %v946, 4294901760
  %v1429 = vsub.f32 %v946, %v1428
  %1430 = vmatpush2.msra.mxu0 %v1429
  %1431 = vmatprep.subr.mxu0 0.0
  %v1432 = vand.u32 %v945, 4294901760
  %v1433 = vsub.f32 %v945, %v1432
  %1434 = vmatpush2.msra.mxu0 %v1433
  %1435 = vmatprep.subr.mxu0 0.0
  %v1436 = vand.u32 %v944, 4294901760
  %v1437 = vsub.f32 %v944, %v1436
  %1438 = vmatpush2.msra.mxu0 %v1437
  %v1439 = vand.u32 %v927, 4294901760
  %v1440 = vsub.f32 %v927, %v1439
  %1441 = vmatprep.mubr.f32.mxu0 %v1440
  %v1442 = vand.u32 %v926, 4294901760
  %v1443 = vsub.f32 %v926, %v1442
  %1444 = vmatmul.mubr.f32.gmra.mxu0 %v1443
  %v1445 = vpop.f32.mrf.mxu0
  %v1446 = vadd.f32 %v1308, %v1445
  %v1447 = vpop.f32.mrf.mxu0
  %1448 = vdwg.mxu0
  %1449 = vmatprep.subr.mxu0 0.0
  %v1450 = vand.u32 %v943, 4294901760
  %1451 = vmatpush1.msra.mxu0 %v1450
  %1452 = vmatprep.subr.mxu0 0.0
  %v1453 = vand.u32 %v942, 4294901760
  %1454 = vmatpush1.msra.mxu0 %v1453
  %1455 = vmatprep.subr.mxu0 0.0
  %v1456 = vand.u32 %v941, 4294901760
  %1457 = vmatpush1.msra.mxu0 %v1456
  %1458 = vmatprep.subr.mxu0 0.0
  %v1459 = vand.u32 %v940, 4294901760
  %1460 = vmatpush1.msra.mxu0 %v1459
  %1461 = vmatprep.subr.mxu0 0.0
  %v1462 = vand.u32 %v939, 4294901760
  %1463 = vmatpush1.msra.mxu0 %v1462
  %1464 = vmatprep.subr.mxu0 0.0
  %v1465 = vand.u32 %v938, 4294901760
  %1466 = vmatpush1.msra.mxu0 %v1465
  %1467 = vmatprep.subr.mxu0 0.0
  %v1468 = vand.u32 %v937, 4294901760
  %1469 = vmatpush1.msra.mxu0 %v1468
  %1470 = vmatprep.subr.mxu0 0.0
  %v1471 = vand.u32 %v936, 4294901760
  %1472 = vmatpush1.msra.mxu0 %v1471
  %1473 = vmatprep.subr.mxu0 0.0
  %v1474 = vand.u32 %v935, 4294901760
  %1475 = vmatpush1.msra.mxu0 %v1474
  %1476 = vmatprep.subr.mxu0 0.0
  %v1477 = vand.u32 %v934, 4294901760
  %1478 = vmatpush1.msra.mxu0 %v1477
  %1479 = vmatprep.subr.mxu0 0.0
  %v1480 = vand.u32 %v933, 4294901760
  %1481 = vmatpush1.msra.mxu0 %v1480
  %1482 = vmatprep.subr.mxu0 0.0
  %v1483 = vand.u32 %v932, 4294901760
  %1484 = vmatpush1.msra.mxu0 %v1483
  %1485 = vmatprep.subr.mxu0 0.0
  %v1486 = vand.u32 %v931, 4294901760
  %1487 = vmatpush1.msra.mxu0 %v1486
  %1488 = vmatprep.subr.mxu0 0.0
  %v1489 = vand.u32 %v930, 4294901760
  %1490 = vmatpush1.msra.mxu0 %v1489
  %1491 = vmatprep.subr.mxu0 0.0
  %v1492 = vand.u32 %v929, 4294901760
  %1493 = vmatpush1.msra.mxu0 %v1492
  %1494 = vmatprep.subr.mxu0 0.0
  %v1495 = vand.u32 %v928, 4294901760
  %1496 = vmatpush1.msra.mxu0 %v1495
  %1497 = vmatprep.subr.mxu0 0.0
  %v1498 = vand.u32 %v959, 4294901760
  %1499 = vmatpush2.msra.mxu0 %v1498
  %1500 = vmatprep.subr.mxu0 0.0
  %v1501 = vand.u32 %v958, 4294901760
  %1502 = vmatpush2.msra.mxu0 %v1501
  %1503 = vmatprep.subr.mxu0 0.0
  %v1504 = vand.u32 %v957, 4294901760
  %1505 = vmatpush2.msra.mxu0 %v1504
  %1506 = vmatprep.subr.mxu0 0.0
  %v1507 = vand.u32 %v956, 4294901760
  %1508 = vmatpush2.msra.mxu0 %v1507
  %1509 = vmatprep.subr.mxu0 0.0
  %v1510 = vand.u32 %v955, 4294901760
  %1511 = vmatpush2.msra.mxu0 %v1510
  %1512 = vmatprep.subr.mxu0 0.0
  %v1513 = vand.u32 %v954, 4294901760
  %1514 = vmatpush2.msra.mxu0 %v1513
  %1515 = vmatprep.subr.mxu0 0.0
  %v1516 = vand.u32 %v953, 4294901760
  %1517 = vmatpush2.msra.mxu0 %v1516
  %1518 = vmatprep.subr.mxu0 0.0
  %v1519 = vand.u32 %v952, 4294901760
  %1520 = vmatpush2.msra.mxu0 %v1519
  %1521 = vmatprep.subr.mxu0 0.0
  %v1522 = vand.u32 %v951, 4294901760
  %1523 = vmatpush2.msra.mxu0 %v1522
  %1524 = vmatprep.subr.mxu0 0.0
  %v1525 = vand.u32 %v950, 4294901760
  %1526 = vmatpush2.msra.mxu0 %v1525
  %1527 = vmatprep.subr.mxu0 0.0
  %v1528 = vand.u32 %v949, 4294901760
  %1529 = vmatpush2.msra.mxu0 %v1528
  %1530 = vmatprep.subr.mxu0 0.0
  %v1531 = vand.u32 %v948, 4294901760
  %1532 = vmatpush2.msra.mxu0 %v1531
  %1533 = vmatprep.subr.mxu0 0.0
  %v1534 = vand.u32 %v947, 4294901760
  %1535 = vmatpush2.msra.mxu0 %v1534
  %1536 = vmatprep.subr.mxu0 0.0
  %v1537 = vand.u32 %v946, 4294901760
  %1538 = vmatpush2.msra.mxu0 %v1537
  %1539 = vmatprep.subr.mxu0 0.0
  %v1540 = vand.u32 %v945, 4294901760
  %1541 = vmatpush2.msra.mxu0 %v1540
  %1542 = vmatprep.subr.mxu0 0.0
  %v1543 = vand.u32 %v944, 4294901760
  %1544 = vmatpush2.msra.mxu0 %v1543
  %v1545 = vand.u32 %v927, 4294901760
  %v1546 = vsub.f32 %v927, %v1545
  %v1547 = vand.u32 %v1546, 4294901760
  %1548 = vmatprep.mubr.f32.mxu0 %v1547
  %v1549 = vand.u32 %v926, 4294901760
  %v1550 = vsub.f32 %v926, %v1549
  %v1551 = vand.u32 %v1550, 4294901760
  %1552 = vmatmul.mubr.f32.gmra.mxu0 %v1551
  %v1553 = vpop.f32.mrf.mxu0
  %v1554 = vadd.f32 %v1446, %v1553
  %v1555 = vpop.f32.mrf.mxu0
  %1556 = vdwg.mxu0
  %1557 = vmatprep.subr.mxu0 0.0
  %v1558 = vand.u32 %v943, 4294901760
  %v1559 = vsub.f32 %v943, %v1558
  %v1560 = vand.u32 %v1559, 4294901760
  %1561 = vmatpush1.msra.mxu0 %v1560
  %1562 = vmatprep.subr.mxu0 0.0
  %v1563 = vand.u32 %v942, 4294901760
  %v1564 = vsub.f32 %v942, %v1563
  %v1565 = vand.u32 %v1564, 4294901760
  %1566 = vmatpush1.msra.mxu0 %v1565
  %1567 = vmatprep.subr.mxu0 0.0
  %v1568 = vand.u32 %v941, 4294901760
  %v1569 = vsub.f32 %v941, %v1568
  %v1570 = vand.u32 %v1569, 4294901760
  %1571 = vmatpush1.msra.mxu0 %v1570
  %1572 = vmatprep.subr.mxu0 0.0
  %v1573 = vand.u32 %v940, 4294901760
  %v1574 = vsub.f32 %v940, %v1573
  %v1575 = vand.u32 %v1574, 4294901760
  %1576 = vmatpush1.msra.mxu0 %v1575
  %1577 = vmatprep.subr.mxu0 0.0
  %v1578 = vand.u32 %v939, 4294901760
  %v1579 = vsub.f32 %v939, %v1578
  %v1580 = vand.u32 %v1579, 4294901760
  %1581 = vmatpush1.msra.mxu0 %v1580
  %1582 = vmatprep.subr.mxu0 0.0
  %v1583 = vand.u32 %v938, 4294901760
  %v1584 = vsub.f32 %v938, %v1583
  %v1585 = vand.u32 %v1584, 4294901760
  %1586 = vmatpush1.msra.mxu0 %v1585
  %1587 = vmatprep.subr.mxu0 0.0
  %v1588 = vand.u32 %v937, 4294901760
  %v1589 = vsub.f32 %v937, %v1588
  %v1590 = vand.u32 %v1589, 4294901760
  %1591 = vmatpush1.msra.mxu0 %v1590
  %1592 = vmatprep.subr.mxu0 0.0
  %v1593 = vand.u32 %v936, 4294901760
  %v1594 = vsub.f32 %v936, %v1593
  %v1595 = vand.u32 %v1594, 4294901760
  %1596 = vmatpush1.msra.mxu0 %v1595
  %1597 = vmatprep.subr.mxu0 0.0
  %v1598 = vand.u32 %v935, 4294901760
  %v1599 = vsub.f32 %v935, %v1598
  %v1600 = vand.u32 %v1599, 4294901760
  %1601 = vmatpush1.msra.mxu0 %v1600
  %1602 = vmatprep.subr.mxu0 0.0
  %v1603 = vand.u32 %v934, 4294901760
  %v1604 = vsub.f32 %v934, %v1603
  %v1605 = vand.u32 %v1604, 4294901760
  %1606 = vmatpush1.msra.mxu0 %v1605
  %1607 = vmatprep.subr.mxu0 0.0
  %v1608 = vand.u32 %v933, 4294901760
  %v1609 = vsub.f32 %v933, %v1608
  %v1610 = vand.u32 %v1609, 4294901760
  %1611 = vmatpush1.msra.mxu0 %v1610
  %1612 = vmatprep.subr.mxu0 0.0
  %v1613 = vand.u32 %v932, 4294901760
  %v1614 = vsub.f32 %v932, %v1613
  %v1615 = vand.u32 %v1614, 4294901760
  %1616 = vmatpush1.msra.mxu0 %v1615
  %1617 = vmatprep.subr.mxu0 0.0
  %v1618 = vand.u32 %v931, 4294901760
  %v1619 = vsub.f32 %v931, %v1618
  %v1620 = vand.u32 %v1619, 4294901760
  %1621 = vmatpush1.msra.mxu0 %v1620
  %1622 = vmatprep.subr.mxu0 0.0
  %v1623 = vand.u32 %v930, 4294901760
  %v1624 = vsub.f32 %v930, %v1623
  %v1625 = vand.u32 %v1624, 4294901760
  %1626 = vmatpush1.msra.mxu0 %v1625
  %1627 = vmatprep.subr.mxu0 0.0
  %v1628 = vand.u32 %v929, 4294901760
  %v1629 = vsub.f32 %v929, %v1628
  %v1630 = vand.u32 %v1629, 4294901760
  %1631 = vmatpush1.msra.mxu0 %v1630
  %1632 = vmatprep.subr.mxu0 0.0
  %v1633 = vand.u32 %v928, 4294901760
  %v1634 = vsub.f32 %v928, %v1633
  %v1635 = vand.u32 %v1634, 4294901760
  %1636 = vmatpush1.msra.mxu0 %v1635
  %1637 = vmatprep.subr.mxu0 0.0
  %v1638 = vand.u32 %v959, 4294901760
  %v1639 = vsub.f32 %v959, %v1638
  %v1640 = vand.u32 %v1639, 4294901760
  %1641 = vmatpush2.msra.mxu0 %v1640
  %1642 = vmatprep.subr.mxu0 0.0
  %v1643 = vand.u32 %v958, 4294901760
  %v1644 = vsub.f32 %v958, %v1643
  %v1645 = vand.u32 %v1644, 4294901760
  %1646 = vmatpush2.msra.mxu0 %v1645
  %1647 = vmatprep.subr.mxu0 0.0
  %v1648 = vand.u32 %v957, 4294901760
  %v1649 = vsub.f32 %v957, %v1648
  %v1650 = vand.u32 %v1649, 4294901760
  %1651 = vmatpush2.msra.mxu0 %v1650
  %1652 = vmatprep.subr.mxu0 0.0
  %v1653 = vand.u32 %v956, 4294901760
  %v1654 = vsub.f32 %v956, %v1653
  %v1655 = vand.u32 %v1654, 4294901760
  %1656 = vmatpush2.msra.mxu0 %v1655
  %1657 = vmatprep.subr.mxu0 0.0
  %v1658 = vand.u32 %v955, 4294901760
  %v1659 = vsub.f32 %v955, %v1658
  %v1660 = vand.u32 %v1659, 4294901760
  %1661 = vmatpush2.msra.mxu0 %v1660
  %1662 = vmatprep.subr.mxu0 0.0
  %v1663 = vand.u32 %v954, 4294901760
  %v1664 = vsub.f32 %v954, %v1663
  %v1665 = vand.u32 %v1664, 4294901760
  %1666 = vmatpush2.msra.mxu0 %v1665
  %1667 = vmatprep.subr.mxu0 0.0
  %v1668 = vand.u32 %v953, 4294901760
  %v1669 = vsub.f32 %v953, %v1668
  %v1670 = vand.u32 %v1669, 4294901760
  %1671 = vmatpush2.msra.mxu0 %v1670
  %1672 = vmatprep.subr.mxu0 0.0
  %v1673 = vand.u32 %v952, 4294901760
  %v1674 = vsub.f32 %v952, %v1673
  %v1675 = vand.u32 %v1674, 4294901760
  %1676 = vmatpush2.msra.mxu0 %v1675
  %1677 = vmatprep.subr.mxu0 0.0
  %v1678 = vand.u32 %v951, 4294901760
  %v1679 = vsub.f32 %v951, %v1678
  %v1680 = vand.u32 %v1679, 4294901760
  %1681 = vmatpush2.msra.mxu0 %v1680
  %1682 = vmatprep.subr.mxu0 0.0
  %v1683 = vand.u32 %v950, 4294901760
  %v1684 = vsub.f32 %v950, %v1683
  %v1685 = vand.u32 %v1684, 4294901760
  %1686 = vmatpush2.msra.mxu0 %v1685
  %1687 = vmatprep.subr.mxu0 0.0
  %v1688 = vand.u32 %v949, 4294901760
  %v1689 = vsub.f32 %v949, %v1688
  %v1690 = vand.u32 %v1689, 4294901760
  %1691 = vmatpush2.msra.mxu0 %v1690
  %1692 = vmatprep.subr.mxu0 0.0
  %v1693 = vand.u32 %v948, 4294901760
  %v1694 = vsub.f32 %v948, %v1693
  %v1695 = vand.u32 %v1694, 4294901760
  %1696 = vmatpush2.msra.mxu0 %v1695
  %1697 = vmatprep.subr.mxu0 0.0
  %v1698 = vand.u32 %v947, 4294901760
  %v1699 = vsub.f32 %v947, %v1698
  %v1700 = vand.u32 %v1699, 4294901760
  %1701 = vmatpush2.msra.mxu0 %v1700
  %1702 = vmatprep.subr.mxu0 0.0
  %v1703 = vand.u32 %v946, 4294901760
  %v1704 = vsub.f32 %v946, %v1703
  %v1705 = vand.u32 %v1704, 4294901760
  %1706 = vmatpush2.msra.mxu0 %v1705
  %1707 = vmatprep.subr.mxu0 0.0
  %v1708 = vand.u32 %v945, 4294901760
  %v1709 = vsub.f32 %v945, %v1708
  %v1710 = vand.u32 %v1709, 4294901760
  %1711 = vmatpush2.msra.mxu0 %v1710
  %1712 = vmatprep.subr.mxu0 0.0
  %v1713 = vand.u32 %v944, 4294901760
  %v1714 = vsub.f32 %v944, %v1713
  %v1715 = vand.u32 %v1714, 4294901760
  %1716 = vmatpush2.msra.mxu0 %v1715
  %v1717 = vand.u32 %v927, 4294901760
  %1718 = vmatprep.mubr.f32.mxu0 %v1717
  %v1719 = vand.u32 %v926, 4294901760
  %1720 = vmatmul.mubr.f32.gmra.mxu0 %v1719
  %v1721 = vpop.f32.mrf.mxu0
  %v1722 = vadd.f32 %v1554, %v1721
  %v1723 = vpop.f32.mrf.mxu0
  %1724 = vdwg.mxu0
  %1725 = vmatprep.subr.mxu0 0.0
  %v1726 = vand.u32 %v943, 4294901760
  %1727 = vmatpush1.msra.mxu0 %v1726
  %1728 = vmatprep.subr.mxu0 0.0
  %v1729 = vand.u32 %v942, 4294901760
  %1730 = vmatpush1.msra.mxu0 %v1729
  %1731 = vmatprep.subr.mxu0 0.0
  %v1732 = vand.u32 %v941, 4294901760
  %1733 = vmatpush1.msra.mxu0 %v1732
  %1734 = vmatprep.subr.mxu0 0.0
  %v1735 = vand.u32 %v940, 4294901760
  %1736 = vmatpush1.msra.mxu0 %v1735
  %1737 = vmatprep.subr.mxu0 0.0
  %v1738 = vand.u32 %v939, 4294901760
  %1739 = vmatpush1.msra.mxu0 %v1738
  %1740 = vmatprep.subr.mxu0 0.0
  %v1741 = vand.u32 %v938, 4294901760
  %1742 = vmatpush1.msra.mxu0 %v1741
  %1743 = vmatprep.subr.mxu0 0.0
  %v1744 = vand.u32 %v937, 4294901760
  %1745 = vmatpush1.msra.mxu0 %v1744
  %1746 = vmatprep.subr.mxu0 0.0
  %v1747 = vand.u32 %v936, 4294901760
  %1748 = vmatpush1.msra.mxu0 %v1747
  %1749 = vmatprep.subr.mxu0 0.0
  %v1750 = vand.u32 %v935, 4294901760
  %1751 = vmatpush1.msra.mxu0 %v1750
  %1752 = vmatprep.subr.mxu0 0.0
  %v1753 = vand.u32 %v934, 4294901760
  %1754 = vmatpush1.msra.mxu0 %v1753
  %1755 = vmatprep.subr.mxu0 0.0
  %v1756 = vand.u32 %v933, 4294901760
  %1757 = vmatpush1.msra.mxu0 %v1756
  %1758 = vmatprep.subr.mxu0 0.0
  %v1759 = vand.u32 %v932, 4294901760
  %1760 = vmatpush1.msra.mxu0 %v1759
  %1761 = vmatprep.subr.mxu0 0.0
  %v1762 = vand.u32 %v931, 4294901760
  %1763 = vmatpush1.msra.mxu0 %v1762
  %1764 = vmatprep.subr.mxu0 0.0
  %v1765 = vand.u32 %v930, 4294901760
  %1766 = vmatpush1.msra.mxu0 %v1765
  %1767 = vmatprep.subr.mxu0 0.0
  %v1768 = vand.u32 %v929, 4294901760
  %1769 = vmatpush1.msra.mxu0 %v1768
  %1770 = vmatprep.subr.mxu0 0.0
  %v1771 = vand.u32 %v928, 4294901760
  %1772 = vmatpush1.msra.mxu0 %v1771
  %1773 = vmatprep.subr.mxu0 0.0
  %v1774 = vand.u32 %v959, 4294901760
  %1775 = vmatpush2.msra.mxu0 %v1774
  %1776 = vmatprep.subr.mxu0 0.0
  %v1777 = vand.u32 %v958, 4294901760
  %1778 = vmatpush2.msra.mxu0 %v1777
  %1779 = vmatprep.subr.mxu0 0.0
  %v1780 = vand.u32 %v957, 4294901760
  %1781 = vmatpush2.msra.mxu0 %v1780
  %1782 = vmatprep.subr.mxu0 0.0
  %v1783 = vand.u32 %v956, 4294901760
  %1784 = vmatpush2.msra.mxu0 %v1783
  %1785 = vmatprep.subr.mxu0 0.0
  %v1786 = vand.u32 %v955, 4294901760
  %1787 = vmatpush2.msra.mxu0 %v1786
  %1788 = vmatprep.subr.mxu0 0.0
  %v1789 = vand.u32 %v954, 4294901760
  %1790 = vmatpush2.msra.mxu0 %v1789
  %1791 = vmatprep.subr.mxu0 0.0
  %v1792 = vand.u32 %v953, 4294901760
  %1793 = vmatpush2.msra.mxu0 %v1792
  %1794 = vmatprep.subr.mxu0 0.0
  %v1795 = vand.u32 %v952, 4294901760
  %1796 = vmatpush2.msra.mxu0 %v1795
  %1797 = vmatprep.subr.mxu0 0.0
  %v1798 = vand.u32 %v951, 4294901760
  %1799 = vmatpush2.msra.mxu0 %v1798
  %1800 = vmatprep.subr.mxu0 0.0
  %v1801 = vand.u32 %v950, 4294901760
  %1802 = vmatpush2.msra.mxu0 %v1801
  %1803 = vmatprep.subr.mxu0 0.0
  %v1804 = vand.u32 %v949, 4294901760
  %1805 = vmatpush2.msra.mxu0 %v1804
  %1806 = vmatprep.subr.mxu0 0.0
  %v1807 = vand.u32 %v948, 4294901760
  %1808 = vmatpush2.msra.mxu0 %v1807
  %1809 = vmatprep.subr.mxu0 0.0
  %v1810 = vand.u32 %v947, 4294901760
  %1811 = vmatpush2.msra.mxu0 %v1810
  %1812 = vmatprep.subr.mxu0 0.0
  %v1813 = vand.u32 %v946, 4294901760
  %1814 = vmatpush2.msra.mxu0 %v1813
  %1815 = vmatprep.subr.mxu0 0.0
  %v1816 = vand.u32 %v945, 4294901760
  %1817 = vmatpush2.msra.mxu0 %v1816
  %1818 = vmatprep.subr.mxu0 0.0
  %v1819 = vand.u32 %v944, 4294901760
  %1820 = vmatpush2.msra.mxu0 %v1819
  %v1821 = vand.u32 %v927, 4294901760
  %1822 = vmatprep.mubr.f32.mxu0 %v1821
  %v1823 = vand.u32 %v926, 4294901760
  %1824 = vmatmul.mubr.f32.gmra.mxu0 %v1823
  %v1825 = vpop.f32.mrf.mxu0
  %v1826 = vadd.f32 %v1722, %v1825
  %v1827 = vpop.f32.mrf.mxu0
  %1828 = vdwg.mxu0
  %v1829 = vmax.f32 %v1826, 0.0
  %v1830 = vld [vmem:[%s5] sm:$0xff]
  %v1831 = vld [vmem:[%s5 + $0x8] sm:$0xff]
  %v1832 = vld [vmem:[%s5 + $0x10] sm:$0xff]
  %v1833 = vld [vmem:[%s5 + $0x18] sm:$0xff]
  %v1834 = vld [vmem:[%s5 + $0x20] sm:$0xff]
  %v1835 = vld [vmem:[%s5 + $0x28] sm:$0xff]
  %v1836 = vld [vmem:[%s5 + $0x30] sm:$0xff]
  %v1837 = vld [vmem:[%s5 + $0x38] sm:$0xff]
  %v1838 = vld [vmem:[%s5 + $0x40] sm:$0xff]
  %v1839 = vld [vmem:[%s5 + $0x48] sm:$0xff]
  %v1840 = vld [vmem:[%s5 + $0x50] sm:$0xff]
  %v1841 = vld [vmem:[%s5 + $0x58] sm:$0xff]
  %v1842 = vld [vmem:[%s5 + $0x60] sm:$0xff]
  %v1843 = vld [vmem:[%s5 + $0x68] sm:$0xff]
  %v1844 = vld [vmem:[%s5 + $0x70] sm:$0xff]
  %v1845 = vld [vmem:[%s5 + $0x78] sm:$0xff]
  %v1846 = vld [vmem:[%s6] sm:$0x1]
  %v1848 = vlaneseq
  %v1849 = vshrl.u32 %v1848, 7
  %v1850 = vsub.s32 0, %v1849
  %v1851 = vrot.slane %v1846, %v1850
  %1853 = vmatprep.subr.mxu0 0.0
  %v1854 = vand.u32 %v1845, 4294901760
  %1855 = vmatpush1.msra.mxu0 %v1854
  %1856 = vmatprep.subr.mxu0 0.0
  %v1857 = vand.u32 %v1844, 4294901760
  %1858 = vmatpush1.msra.mxu0 %v1857
  %1859 = vmatprep.subr.mxu0 0.0
  %v1860 = vand.u32 %v1843, 4294901760
  %1861 = vmatpush1.msra.mxu0 %v1860
  %1862 = vmatprep.subr.mxu0 0.0
  %v1863 = vand.u32 %v1842, 4294901760
  %1864 = vmatpush1.msra.mxu0 %v1863
  %1865 = vmatprep.subr.mxu0 0.0
  %v1866 = vand.u32 %v1841, 4294901760
  %1867 = vmatpush1.msra.mxu0 %v1866
  %1868 = vmatprep.subr.mxu0 0.0
  %v1869 = vand.u32 %v1840, 4294901760
  %1870 = vmatpush1.msra.mxu0 %v1869
  %1871 = vmatprep.subr.mxu0 0.0
  %v1872 = vand.u32 %v1839, 4294901760
  %1873 = vmatpush1.msra.mxu0 %v1872
  %1874 = vmatprep.subr.mxu0 0.0
  %v1875 = vand.u32 %v1838, 4294901760
  %1876 = vmatpush1.msra.mxu0 %v1875
  %1877 = vmatprep.subr.mxu0 0.0
  %v1878 = vand.u32 %v1837, 4294901760
  %1879 = vmatpush1.msra.mxu0 %v1878
  %1880 = vmatprep.subr.mxu0 0.0
  %v1881 = vand.u32 %v1836, 4294901760
  %1882 = vmatpush1.msra.mxu0 %v1881
  %1883 = vmatprep.subr.mxu0 0.0
  %v1884 = vand.u32 %v1835, 4294901760
  %1885 = vmatpush1.msra.mxu0 %v1884
  %1886 = vmatprep.subr.mxu0 0.0
  %v1887 = vand.u32 %v1834, 4294901760
  %1888 = vmatpush1.msra.mxu0 %v1887
  %1889 = vmatprep.subr.mxu0 0.0
  %v1890 = vand.u32 %v1833, 4294901760
  %1891 = vmatpush1.msra.mxu0 %v1890
  %1892 = vmatprep.subr.mxu0 0.0
  %v1893 = vand.u32 %v1832, 4294901760
  %1894 = vmatpush1.msra.mxu0 %v1893
  %1895 = vmatprep.subr.mxu0 0.0
  %v1896 = vand.u32 %v1831, 4294901760
  %1897 = vmatpush1.msra.mxu0 %v1896
  %1898 = vmatprep.subr.mxu0 0.0
  %v1899 = vand.u32 %v1830, 4294901760
  %1900 = vmatpush1.msra.mxu0 %v1899
  %1901 = vmatprep.subr.mxu0 0.0
  %1902 = vmatpush2.msra.mxu0 0.0
  %1903 = vmatprep.subr.mxu0 0.0
  %1904 = vmatpush2.msra.mxu0 0.0
  %1905 = vmatprep.subr.mxu0 0.0
  %1906 = vmatpush2.msra.mxu0 0.0
  %1907 = vmatprep.subr.mxu0 0.0
  %1908 = vmatpush2.msra.mxu0 0.0
  %1909 = vmatprep.subr.mxu0 0.0
  %1910 = vmatpush2.msra.mxu0 0.0
  %1911 = vmatprep.subr.mxu0 0.0
  %1912 = vmatpush2.msra.mxu0 0.0
  %1913 = vmatprep.subr.mxu0 0.0
  %1914 = vmatpush2.msra.mxu0 0.0
  %1915 = vmatprep.subr.mxu0 0.0
  %1916 = vmatpush2.msra.mxu0 0.0
  %1917 = vmatprep.subr.mxu0 0.0
  %1918 = vmatpush2.msra.mxu0 0.0
  %1919 = vmatprep.subr.mxu0 0.0
  %1920 = vmatpush2.msra.mxu0 0.0
  %1921 = vmatprep.subr.mxu0 0.0
  %1922 = vmatpush2.msra.mxu0 0.0
  %1923 = vmatprep.subr.mxu0 0.0
  %1924 = vmatpush2.msra.mxu0 0.0
  %1925 = vmatprep.subr.mxu0 0.0
  %1926 = vmatpush2.msra.mxu0 0.0
  %1927 = vmatprep.subr.mxu0 0.0
  %1928 = vmatpush2.msra.mxu0 0.0
  %1929 = vmatprep.subr.mxu0 0.0
  %1930 = vmatpush2.msra.mxu0 0.0
  %1931 = vmatprep.subr.mxu0 0.0
  %1932 = vmatpush2.msra.mxu0 0.0
  %1933 = vmatprep.mubr.f32.mxu0 0.0
  %v1934 = vand.u32 %v1829, 4294901760
  %v1935 = vsub.f32 %v1829, %v1934
  %v1936 = vand.u32 %v1935, 4294901760
  %v1937 = vsub.f32 %v1935, %v1936
  %v1938 = vand.u32 %v1937, 4294901760
  %1939 = vmatmul.mubr.f32.gmra.mxu0 %v1938
  %v1940 = vpop.f32.mrf.mxu0
  %v1941 = vadd.f32 %v1851, %v1940
  %v1942 = vpop.f32.mrf.mxu0
  %1943 = vdwg.mxu0
  %1944 = vmatprep.subr.mxu0 0.0
  %v1945 = vand.u32 %v1845, 4294901760
  %v1946 = vsub.f32 %v1845, %v1945
  %v1947 = vand.u32 %v1946, 4294901760
  %v1948 = vsub.f32 %v1946, %v1947
  %v1949 = vand.u32 %v1948, 4294901760
  %1950 = vmatpush1.msra.mxu0 %v1949
  %1951 = vmatprep.subr.mxu0 0.0
  %v1952 = vand.u32 %v1844, 4294901760
  %v1953 = vsub.f32 %v1844, %v1952
  %v1954 = vand.u32 %v1953, 4294901760
  %v1955 = vsub.f32 %v1953, %v1954
  %v1956 = vand.u32 %v1955, 4294901760
  %1957 = vmatpush1.msra.mxu0 %v1956
  %1958 = vmatprep.subr.mxu0 0.0
  %v1959 = vand.u32 %v1843, 4294901760
  %v1960 = vsub.f32 %v1843, %v1959
  %v1961 = vand.u32 %v1960, 4294901760
  %v1962 = vsub.f32 %v1960, %v1961
  %v1963 = vand.u32 %v1962, 4294901760
  %1964 = vmatpush1.msra.mxu0 %v1963
  %1965 = vmatprep.subr.mxu0 0.0
  %v1966 = vand.u32 %v1842, 4294901760
  %v1967 = vsub.f32 %v1842, %v1966
  %v1968 = vand.u32 %v1967, 4294901760
  %v1969 = vsub.f32 %v1967, %v1968
  %v1970 = vand.u32 %v1969, 4294901760
  %1971 = vmatpush1.msra.mxu0 %v1970
  %1972 = vmatprep.subr.mxu0 0.0
  %v1973 = vand.u32 %v1841, 4294901760
  %v1974 = vsub.f32 %v1841, %v1973
  %v1975 = vand.u32 %v1974, 4294901760
  %v1976 = vsub.f32 %v1974, %v1975
  %v1977 = vand.u32 %v1976, 4294901760
  %1978 = vmatpush1.msra.mxu0 %v1977
  %1979 = vmatprep.subr.mxu0 0.0
  %v1980 = vand.u32 %v1840, 4294901760
  %v1981 = vsub.f32 %v1840, %v1980
  %v1982 = vand.u32 %v1981, 4294901760
  %v1983 = vsub.f32 %v1981, %v1982
  %v1984 = vand.u32 %v1983, 4294901760
  %1985 = vmatpush1.msra.mxu0 %v1984
  %1986 = vmatprep.subr.mxu0 0.0
  %v1987 = vand.u32 %v1839, 4294901760
  %v1988 = vsub.f32 %v1839, %v1987
  %v1989 = vand.u32 %v1988, 4294901760
  %v1990 = vsub.f32 %v1988, %v1989
  %v1991 = vand.u32 %v1990, 4294901760
  %1992 = vmatpush1.msra.mxu0 %v1991
  %1993 = vmatprep.subr.mxu0 0.0
  %v1994 = vand.u32 %v1838, 4294901760
  %v1995 = vsub.f32 %v1838, %v1994
  %v1996 = vand.u32 %v1995, 4294901760
  %v1997 = vsub.f32 %v1995, %v1996
  %v1998 = vand.u32 %v1997, 4294901760
  %1999 = vmatpush1.msra.mxu0 %v1998
  %2000 = vmatprep.subr.mxu0 0.0
  %v2001 = vand.u32 %v1837, 4294901760
  %v2002 = vsub.f32 %v1837, %v2001
  %v2003 = vand.u32 %v2002, 4294901760
  %v2004 = vsub.f32 %v2002, %v2003
  %v2005 = vand.u32 %v2004, 4294901760
  %2006 = vmatpush1.msra.mxu0 %v2005
  %2007 = vmatprep.subr.mxu0 0.0
  %v2008 = vand.u32 %v1836, 4294901760
  %v2009 = vsub.f32 %v1836, %v2008
  %v2010 = vand.u32 %v2009, 4294901760
  %v2011 = vsub.f32 %v2009, %v2010
  %v2012 = vand.u32 %v2011, 4294901760
  %2013 = vmatpush1.msra.mxu0 %v2012
  %2014 = vmatprep.subr.mxu0 0.0
  %v2015 = vand.u32 %v1835, 4294901760
  %v2016 = vsub.f32 %v1835, %v2015
  %v2017 = vand.u32 %v2016, 4294901760
  %v2018 = vsub.f32 %v2016, %v2017
  %v2019 = vand.u32 %v2018, 4294901760
  %2020 = vmatpush1.msra.mxu0 %v2019
  %2021 = vmatprep.subr.mxu0 0.0
  %v2022 = vand.u32 %v1834, 4294901760
  %v2023 = vsub.f32 %v1834, %v2022
  %v2024 = vand.u32 %v2023, 4294901760
  %v2025 = vsub.f32 %v2023, %v2024
  %v2026 = vand.u32 %v2025, 4294901760
  %2027 = vmatpush1.msra.mxu0 %v2026
  %2028 = vmatprep.subr.mxu0 0.0
  %v2029 = vand.u32 %v1833, 4294901760
  %v2030 = vsub.f32 %v1833, %v2029
  %v2031 = vand.u32 %v2030, 4294901760
  %v2032 = vsub.f32 %v2030, %v2031
  %v2033 = vand.u32 %v2032, 4294901760
  %2034 = vmatpush1.msra.mxu0 %v2033
  %2035 = vmatprep.subr.mxu0 0.0
  %v2036 = vand.u32 %v1832, 4294901760
  %v2037 = vsub.f32 %v1832, %v2036
  %v2038 = vand.u32 %v2037, 4294901760
  %v2039 = vsub.f32 %v2037, %v2038
  %v2040 = vand.u32 %v2039, 4294901760
  %2041 = vmatpush1.msra.mxu0 %v2040
  %2042 = vmatprep.subr.mxu0 0.0
  %v2043 = vand.u32 %v1831, 4294901760
  %v2044 = vsub.f32 %v1831, %v2043
  %v2045 = vand.u32 %v2044, 4294901760
  %v2046 = vsub.f32 %v2044, %v2045
  %v2047 = vand.u32 %v2046, 4294901760
  %2048 = vmatpush1.msra.mxu0 %v2047
  %2049 = vmatprep.subr.mxu0 0.0
  %v2050 = vand.u32 %v1830, 4294901760
  %v2051 = vsub.f32 %v1830, %v2050
  %v2052 = vand.u32 %v2051, 4294901760
  %v2053 = vsub.f32 %v2051, %v2052
  %v2054 = vand.u32 %v2053, 4294901760
  %2055 = vmatpush1.msra.mxu0 %v2054
  %2056 = vmatprep.subr.mxu0 0.0
  %2057 = vmatpush2.msra.mxu0 0.0
  %2058 = vmatprep.subr.mxu0 0.0
  %2059 = vmatpush2.msra.mxu0 0.0
  %2060 = vmatprep.subr.mxu0 0.0
  %2061 = vmatpush2.msra.mxu0 0.0
  %2062 = vmatprep.subr.mxu0 0.0
  %2063 = vmatpush2.msra.mxu0 0.0
  %2064 = vmatprep.subr.mxu0 0.0
  %2065 = vmatpush2.msra.mxu0 0.0
  %2066 = vmatprep.subr.mxu0 0.0
  %2067 = vmatpush2.msra.mxu0 0.0
  %2068 = vmatprep.subr.mxu0 0.0
  %2069 = vmatpush2.msra.mxu0 0.0
  %2070 = vmatprep.subr.mxu0 0.0
  %2071 = vmatpush2.msra.mxu0 0.0
  %2072 = vmatprep.subr.mxu0 0.0
  %2073 = vmatpush2.msra.mxu0 0.0
  %2074 = vmatprep.subr.mxu0 0.0
  %2075 = vmatpush2.msra.mxu0 0.0
  %2076 = vmatprep.subr.mxu0 0.0
  %2077 = vmatpush2.msra.mxu0 0.0
  %2078 = vmatprep.subr.mxu0 0.0
  %2079 = vmatpush2.msra.mxu0 0.0
  %2080 = vmatprep.subr.mxu0 0.0
  %2081 = vmatpush2.msra.mxu0 0.0
  %2082 = vmatprep.subr.mxu0 0.0
  %2083 = vmatpush2.msra.mxu0 0.0
  %2084 = vmatprep.subr.mxu0 0.0
  %2085 = vmatpush2.msra.mxu0 0.0
  %2086 = vmatprep.subr.mxu0 0.0
  %2087 = vmatpush2.msra.mxu0 0.0
  %2088 = vmatprep.mubr.f32.mxu0 0.0
  %v2089 = vand.u32 %v1829, 4294901760
  %2090 = vmatmul.mubr.f32.gmra.mxu0 %v2089
  %v2091 = vpop.f32.mrf.mxu0
  %v2092 = vadd.f32 %v1941, %v2091
  %v2093 = vpop.f32.mrf.mxu0
  %2094 = vdwg.mxu0
  %2095 = vmatprep.subr.mxu0 0.0
  %v2096 = vand.u32 %v1845, 4294901760
  %v2097 = vsub.f32 %v1845, %v2096
  %2098 = vmatpush1.msra.mxu0 %v2097
  %2099 = vmatprep.subr.mxu0 0.0
  %v2100 = vand.u32 %v1844, 4294901760
  %v2101 = vsub.f32 %v1844, %v2100
  %2102 = vmatpush1.msra.mxu0 %v2101
  %2103 = vmatprep.subr.mxu0 0.0
  %v2104 = vand.u32 %v1843, 4294901760
  %v2105 = vsub.f32 %v1843, %v2104
  %2106 = vmatpush1.msra.mxu0 %v2105
  %2107 = vmatprep.subr.mxu0 0.0
  %v2108 = vand.u32 %v1842, 4294901760
  %v2109 = vsub.f32 %v1842, %v2108
  %2110 = vmatpush1.msra.mxu0 %v2109
  %2111 = vmatprep.subr.mxu0 0.0
  %v2112 = vand.u32 %v1841, 4294901760
  %v2113 = vsub.f32 %v1841, %v2112
  %2114 = vmatpush1.msra.mxu0 %v2113
  %2115 = vmatprep.subr.mxu0 0.0
  %v2116 = vand.u32 %v1840, 4294901760
  %v2117 = vsub.f32 %v1840, %v2116
  %2118 = vmatpush1.msra.mxu0 %v2117
  %2119 = vmatprep.subr.mxu0 0.0
  %v2120 = vand.u32 %v1839, 4294901760
  %v2121 = vsub.f32 %v1839, %v2120
  %2122 = vmatpush1.msra.mxu0 %v2121
  %2123 = vmatprep.subr.mxu0 0.0
  %v2124 = vand.u32 %v1838, 4294901760
  %v2125 = vsub.f32 %v1838, %v2124
  %2126 = vmatpush1.msra.mxu0 %v2125
  %2127 = vmatprep.subr.mxu0 0.0
  %v2128 = vand.u32 %v1837, 4294901760
  %v2129 = vsub.f32 %v1837, %v2128
  %2130 = vmatpush1.msra.mxu0 %v2129
  %2131 = vmatprep.subr.mxu0 0.0
  %v2132 = vand.u32 %v1836, 4294901760
  %v2133 = vsub.f32 %v1836, %v2132
  %2134 = vmatpush1.msra.mxu0 %v2133
  %2135 = vmatprep.subr.mxu0 0.0
  %v2136 = vand.u32 %v1835, 4294901760
  %v2137 = vsub.f32 %v1835, %v2136
  %2138 = vmatpush1.msra.mxu0 %v2137
  %2139 = vmatprep.subr.mxu0 0.0
  %v2140 = vand.u32 %v1834, 4294901760
  %v2141 = vsub.f32 %v1834, %v2140
  %2142 = vmatpush1.msra.mxu0 %v2141
  %2143 = vmatprep.subr.mxu0 0.0
  %v2144 = vand.u32 %v1833, 4294901760
  %v2145 = vsub.f32 %v1833, %v2144
  %2146 = vmatpush1.msra.mxu0 %v2145
  %2147 = vmatprep.subr.mxu0 0.0
  %v2148 = vand.u32 %v1832, 4294901760
  %v2149 = vsub.f32 %v1832, %v2148
  %2150 = vmatpush1.msra.mxu0 %v2149
  %2151 = vmatprep.subr.mxu0 0.0
  %v2152 = vand.u32 %v1831, 4294901760
  %v2153 = vsub.f32 %v1831, %v2152
  %2154 = vmatpush1.msra.mxu0 %v2153
  %2155 = vmatprep.subr.mxu0 0.0
  %v2156 = vand.u32 %v1830, 4294901760
  %v2157 = vsub.f32 %v1830, %v2156
  %2158 = vmatpush1.msra.mxu0 %v2157
  %2159 = vmatprep.subr.mxu0 0.0
  %2160 = vmatpush2.msra.mxu0 0.0
  %2161 = vmatprep.subr.mxu0 0.0
  %2162 = vmatpush2.msra.mxu0 0.0
  %2163 = vmatprep.subr.mxu0 0.0
  %2164 = vmatpush2.msra.mxu0 0.0
  %2165 = vmatprep.subr.mxu0 0.0
  %2166 = vmatpush2.msra.mxu0 0.0
  %2167 = vmatprep.subr.mxu0 0.0
  %2168 = vmatpush2.msra.mxu0 0.0
  %2169 = vmatprep.subr.mxu0 0.0
  %2170 = vmatpush2.msra.mxu0 0.0
  %2171 = vmatprep.subr.mxu0 0.0
  %2172 = vmatpush2.msra.mxu0 0.0
  %2173 = vmatprep.subr.mxu0 0.0
  %2174 = vmatpush2.msra.mxu0 0.0
  %2175 = vmatprep.subr.mxu0 0.0
  %2176 = vmatpush2.msra.mxu0 0.0
  %2177 = vmatprep.subr.mxu0 0.0
  %2178 = vmatpush2.msra.mxu0 0.0
  %2179 = vmatprep.subr.mxu0 0.0
  %2180 = vmatpush2.msra.mxu0 0.0
  %2181 = vmatprep.subr.mxu0 0.0
  %2182 = vmatpush2.msra.mxu0 0.0
  %2183 = vmatprep.subr.mxu0 0.0
  %2184 = vmatpush2.msra.mxu0 0.0
  %2185 = vmatprep.subr.mxu0 0.0
  %2186 = vmatpush2.msra.mxu0 0.0
  %2187 = vmatprep.subr.mxu0 0.0
  %2188 = vmatpush2.msra.mxu0 0.0
  %2189 = vmatprep.subr.mxu0 0.0
  %2190 = vmatpush2.msra.mxu0 0.0
  %2191 = vmatprep.mubr.f32.mxu0 0.0
  %v2192 = vand.u32 %v1829, 4294901760
  %v2193 = vsub.f32 %v1829, %v2192
  %2194 = vmatmul.mubr.f32.gmra.mxu0 %v2193
  %v2195 = vpop.f32.mrf.mxu0
  %v2196 = vadd.f32 %v2092, %v2195
  %v2197 = vpop.f32.mrf.mxu0
  %2198 = vdwg.mxu0
  %2199 = vmatprep.subr.mxu0 0.0
  %v2200 = vand.u32 %v1845, 4294901760
  %2201 = vmatpush1.msra.mxu0 %v2200
  %2202 = vmatprep.subr.mxu0 0.0
  %v2203 = vand.u32 %v1844, 4294901760
  %2204 = vmatpush1.msra.mxu0 %v2203
  %2205 = vmatprep.subr.mxu0 0.0
  %v2206 = vand.u32 %v1843, 4294901760
  %2207 = vmatpush1.msra.mxu0 %v2206
  %2208 = vmatprep.subr.mxu0 0.0
  %v2209 = vand.u32 %v1842, 4294901760
  %2210 = vmatpush1.msra.mxu0 %v2209
  %2211 = vmatprep.subr.mxu0 0.0
  %v2212 = vand.u32 %v1841, 4294901760
  %2213 = vmatpush1.msra.mxu0 %v2212
  %2214 = vmatprep.subr.mxu0 0.0
  %v2215 = vand.u32 %v1840, 4294901760
  %2216 = vmatpush1.msra.mxu0 %v2215
  %2217 = vmatprep.subr.mxu0 0.0
  %v2218 = vand.u32 %v1839, 4294901760
  %2219 = vmatpush1.msra.mxu0 %v2218
  %2220 = vmatprep.subr.mxu0 0.0
  %v2221 = vand.u32 %v1838, 4294901760
  %2222 = vmatpush1.msra.mxu0 %v2221
  %2223 = vmatprep.subr.mxu0 0.0
  %v2224 = vand.u32 %v1837, 4294901760
  %2225 = vmatpush1.msra.mxu0 %v2224
  %2226 = vmatprep.subr.mxu0 0.0
  %v2227 = vand.u32 %v1836, 4294901760
  %2228 = vmatpush1.msra.mxu0 %v2227
  %2229 = vmatprep.subr.mxu0 0.0
  %v2230 = vand.u32 %v1835, 4294901760
  %2231 = vmatpush1.msra.mxu0 %v2230
  %2232 = vmatprep.subr.mxu0 0.0
  %v2233 = vand.u32 %v1834, 4294901760
  %2234 = vmatpush1.msra.mxu0 %v2233
  %2235 = vmatprep.subr.mxu0 0.0
  %v2236 = vand.u32 %v1833, 4294901760
  %2237 = vmatpush1.msra.mxu0 %v2236
  %2238 = vmatprep.subr.mxu0 0.0
  %v2239 = vand.u32 %v1832, 4294901760
  %2240 = vmatpush1.msra.mxu0 %v2239
  %2241 = vmatprep.subr.mxu0 0.0
  %v2242 = vand.u32 %v1831, 4294901760
  %2243 = vmatpush1.msra.mxu0 %v2242
  %2244 = vmatprep.subr.mxu0 0.0
  %v2245 = vand.u32 %v1830, 4294901760
  %2246 = vmatpush1.msra.mxu0 %v2245
  %2247 = vmatprep.subr.mxu0 0.0
  %2248 = vmatpush2.msra.mxu0 0.0
  %2249 = vmatprep.subr.mxu0 0.0
  %2250 = vmatpush2.msra.mxu0 0.0
  %2251 = vmatprep.subr.mxu0 0.0
  %2252 = vmatpush2.msra.mxu0 0.0
  %2253 = vmatprep.subr.mxu0 0.0
  %2254 = vmatpush2.msra.mxu0 0.0
  %2255 = vmatprep.subr.mxu0 0.0
  %2256 = vmatpush2.msra.mxu0 0.0
  %2257 = vmatprep.subr.mxu0 0.0
  %2258 = vmatpush2.msra.mxu0 0.0
  %2259 = vmatprep.subr.mxu0 0.0
  %2260 = vmatpush2.msra.mxu0 0.0
  %2261 = vmatprep.subr.mxu0 0.0
  %2262 = vmatpush2.msra.mxu0 0.0
  %2263 = vmatprep.subr.mxu0 0.0
  %2264 = vmatpush2.msra.mxu0 0.0
  %2265 = vmatprep.subr.mxu0 0.0
  %2266 = vmatpush2.msra.mxu0 0.0
  %2267 = vmatprep.subr.mxu0 0.0
  %2268 = vmatpush2.msra.mxu0 0.0
  %2269 = vmatprep.subr.mxu0 0.0
  %2270 = vmatpush2.msra.mxu0 0.0
  %2271 = vmatprep.subr.mxu0 0.0
  %2272 = vmatpush2.msra.mxu0 0.0
  %2273 = vmatprep.subr.mxu0 0.0
  %2274 = vmatpush2.msra.mxu0 0.0
  %2275 = vmatprep.subr.mxu0 0.0
  %2276 = vmatpush2.msra.mxu0 0.0
  %2277 = vmatprep.subr.mxu0 0.0
  %2278 = vmatpush2.msra.mxu0 0.0
  %2279 = vmatprep.mubr.f32.mxu0 0.0
  %v2280 = vand.u32 %v1829, 4294901760
  %v2281 = vsub.f32 %v1829, %v2280
  %v2282 = vand.u32 %v2281, 4294901760
  %2283 = vmatmul.mubr.f32.gmra.mxu0 %v2282
  %v2284 = vpop.f32.mrf.mxu0
  %v2285 = vadd.f32 %v2196, %v2284
  %v2286 = vpop.f32.mrf.mxu0
  %2287 = vdwg.mxu0
  %2288 = vmatprep.subr.mxu0 0.0
  %v2289 = vand.u32 %v1845, 4294901760
  %v2290 = vsub.f32 %v1845, %v2289
  %v2291 = vand.u32 %v2290, 4294901760
  %2292 = vmatpush1.msra.mxu0 %v2291
  %2293 = vmatprep.subr.mxu0 0.0
  %v2294 = vand.u32 %v1844, 4294901760
  %v2295 = vsub.f32 %v1844, %v2294
  %v2296 = vand.u32 %v2295, 4294901760
  %2297 = vmatpush1.msra.mxu0 %v2296
  %2298 = vmatprep.subr.mxu0 0.0
  %v2299 = vand.u32 %v1843, 4294901760
  %v2300 = vsub.f32 %v1843, %v2299
  %v2301 = vand.u32 %v2300, 4294901760
  %2302 = vmatpush1.msra.mxu0 %v2301
  %2303 = vmatprep.subr.mxu0 0.0
  %v2304 = vand.u32 %v1842, 4294901760
  %v2305 = vsub.f32 %v1842, %v2304
  %v2306 = vand.u32 %v2305, 4294901760
  %2307 = vmatpush1.msra.mxu0 %v2306
  %2308 = vmatprep.subr.mxu0 0.0
  %v2309 = vand.u32 %v1841, 4294901760
  %v2310 = vsub.f32 %v1841, %v2309
  %v2311 = vand.u32 %v2310, 4294901760
  %2312 = vmatpush1.msra.mxu0 %v2311
  %2313 = vmatprep.subr.mxu0 0.0
  %v2314 = vand.u32 %v1840, 4294901760
  %v2315 = vsub.f32 %v1840, %v2314
  %v2316 = vand.u32 %v2315, 4294901760
  %2317 = vmatpush1.msra.mxu0 %v2316
  %2318 = vmatprep.subr.mxu0 0.0
  %v2319 = vand.u32 %v1839, 4294901760
  %v2320 = vsub.f32 %v1839, %v2319
  %v2321 = vand.u32 %v2320, 4294901760
  %2322 = vmatpush1.msra.mxu0 %v2321
  %2323 = vmatprep.subr.mxu0 0.0
  %v2324 = vand.u32 %v1838, 4294901760
  %v2325 = vsub.f32 %v1838, %v2324
  %v2326 = vand.u32 %v2325, 4294901760
  %2327 = vmatpush1.msra.mxu0 %v2326
  %2328 = vmatprep.subr.mxu0 0.0
  %v2329 = vand.u32 %v1837, 4294901760
  %v2330 = vsub.f32 %v1837, %v2329
  %v2331 = vand.u32 %v2330, 4294901760
  %2332 = vmatpush1.msra.mxu0 %v2331
  %2333 = vmatprep.subr.mxu0 0.0
  %v2334 = vand.u32 %v1836, 4294901760
  %v2335 = vsub.f32 %v1836, %v2334
  %v2336 = vand.u32 %v2335, 4294901760
  %2337 = vmatpush1.msra.mxu0 %v2336
  %2338 = vmatprep.subr.mxu0 0.0
  %v2339 = vand.u32 %v1835, 4294901760
  %v2340 = vsub.f32 %v1835, %v2339
  %v2341 = vand.u32 %v2340, 4294901760
  %2342 = vmatpush1.msra.mxu0 %v2341
  %2343 = vmatprep.subr.mxu0 0.0
  %v2344 = vand.u32 %v1834, 4294901760
  %v2345 = vsub.f32 %v1834, %v2344
  %v2346 = vand.u32 %v2345, 4294901760
  %2347 = vmatpush1.msra.mxu0 %v2346
  %2348 = vmatprep.subr.mxu0 0.0
  %v2349 = vand.u32 %v1833, 4294901760
  %v2350 = vsub.f32 %v1833, %v2349
  %v2351 = vand.u32 %v2350, 4294901760
  %2352 = vmatpush1.msra.mxu0 %v2351
  %2353 = vmatprep.subr.mxu0 0.0
  %v2354 = vand.u32 %v1832, 4294901760
  %v2355 = vsub.f32 %v1832, %v2354
  %v2356 = vand.u32 %v2355, 4294901760
  %2357 = vmatpush1.msra.mxu0 %v2356
  %2358 = vmatprep.subr.mxu0 0.0
  %v2359 = vand.u32 %v1831, 4294901760
  %v2360 = vsub.f32 %v1831, %v2359
  %v2361 = vand.u32 %v2360, 4294901760
  %2362 = vmatpush1.msra.mxu0 %v2361
  %2363 = vmatprep.subr.mxu0 0.0
  %v2364 = vand.u32 %v1830, 4294901760
  %v2365 = vsub.f32 %v1830, %v2364
  %v2366 = vand.u32 %v2365, 4294901760
  %2367 = vmatpush1.msra.mxu0 %v2366
  %2368 = vmatprep.subr.mxu0 0.0
  %2369 = vmatpush2.msra.mxu0 0.0
  %2370 = vmatprep.subr.mxu0 0.0
  %2371 = vmatpush2.msra.mxu0 0.0
  %2372 = vmatprep.subr.mxu0 0.0
  %2373 = vmatpush2.msra.mxu0 0.0
  %2374 = vmatprep.subr.mxu0 0.0
  %2375 = vmatpush2.msra.mxu0 0.0
  %2376 = vmatprep.subr.mxu0 0.0
  %2377 = vmatpush2.msra.mxu0 0.0
  %2378 = vmatprep.subr.mxu0 0.0
  %2379 = vmatpush2.msra.mxu0 0.0
  %2380 = vmatprep.subr.mxu0 0.0
  %2381 = vmatpush2.msra.mxu0 0.0
  %2382 = vmatprep.subr.mxu0 0.0
  %2383 = vmatpush2.msra.mxu0 0.0
  %2384 = vmatprep.subr.mxu0 0.0
  %2385 = vmatpush2.msra.mxu0 0.0
  %2386 = vmatprep.subr.mxu0 0.0
  %2387 = vmatpush2.msra.mxu0 0.0
  %2388 = vmatprep.subr.mxu0 0.0
  %2389 = vmatpush2.msra.mxu0 0.0
  %2390 = vmatprep.subr.mxu0 0.0
  %2391 = vmatpush2.msra.mxu0 0.0
  %2392 = vmatprep.subr.mxu0 0.0
  %2393 = vmatpush2.msra.mxu0 0.0
  %2394 = vmatprep.subr.mxu0 0.0
  %2395 = vmatpush2.msra.mxu0 0.0
  %2396 = vmatprep.subr.mxu0 0.0
  %2397 = vmatpush2.msra.mxu0 0.0
  %2398 = vmatprep.subr.mxu0 0.0
  %2399 = vmatpush2.msra.mxu0 0.0
  %2400 = vmatprep.mubr.f32.mxu0 0.0
  %v2401 = vand.u32 %v1829, 4294901760
  %2402 = vmatmul.mubr.f32.gmra.mxu0 %v2401
  %v2403 = vpop.f32.mrf.mxu0
  %v2404 = vadd.f32 %v2285, %v2403
  %v2405 = vpop.f32.mrf.mxu0
  %2406 = vdwg.mxu0
  %2407 = vmatprep.subr.mxu0 0.0
  %v2408 = vand.u32 %v1845, 4294901760
  %2409 = vmatpush1.msra.mxu0 %v2408
  %2410 = vmatprep.subr.mxu0 0.0
  %v2411 = vand.u32 %v1844, 4294901760
  %2412 = vmatpush1.msra.mxu0 %v2411
  %2413 = vmatprep.subr.mxu0 0.0
  %v2414 = vand.u32 %v1843, 4294901760
  %2415 = vmatpush1.msra.mxu0 %v2414
  %2416 = vmatprep.subr.mxu0 0.0
  %v2417 = vand.u32 %v1842, 4294901760
  %2418 = vmatpush1.msra.mxu0 %v2417
  %2419 = vmatprep.subr.mxu0 0.0
  %v2420 = vand.u32 %v1841, 4294901760
  %2421 = vmatpush1.msra.mxu0 %v2420
  %2422 = vmatprep.subr.mxu0 0.0
  %v2423 = vand.u32 %v1840, 4294901760
  %2424 = vmatpush1.msra.mxu0 %v2423
  %2425 = vmatprep.subr.mxu0 0.0
  %v2426 = vand.u32 %v1839, 4294901760
  %2427 = vmatpush1.msra.mxu0 %v2426
  %2428 = vmatprep.subr.mxu0 0.0
  %v2429 = vand.u32 %v1838, 4294901760
  %2430 = vmatpush1.msra.mxu0 %v2429
  %2431 = vmatprep.subr.mxu0 0.0
  %v2432 = vand.u32 %v1837, 4294901760
  %2433 = vmatpush1.msra.mxu0 %v2432
  %2434 = vmatprep.subr.mxu0 0.0
  %v2435 = vand.u32 %v1836, 4294901760
  %2436 = vmatpush1.msra.mxu0 %v2435
  %2437 = vmatprep.subr.mxu0 0.0
  %v2438 = vand.u32 %v1835, 4294901760
  %2439 = vmatpush1.msra.mxu0 %v2438
  %2440 = vmatprep.subr.mxu0 0.0
  %v2441 = vand.u32 %v1834, 4294901760
  %2442 = vmatpush1.msra.mxu0 %v2441
  %2443 = vmatprep.subr.mxu0 0.0
  %v2444 = vand.u32 %v1833, 4294901760
  %2445 = vmatpush1.msra.mxu0 %v2444
  %2446 = vmatprep.subr.mxu0 0.0
  %v2447 = vand.u32 %v1832, 4294901760
  %2448 = vmatpush1.msra.mxu0 %v2447
  %2449 = vmatprep.subr.mxu0 0.0
  %v2450 = vand.u32 %v1831, 4294901760
  %2451 = vmatpush1.msra.mxu0 %v2450
  %2452 = vmatprep.subr.mxu0 0.0
  %v2453 = vand.u32 %v1830, 4294901760
  %2454 = vmatpush1.msra.mxu0 %v2453
  %2455 = vmatprep.subr.mxu0 0.0
  %2456 = vmatpush2.msra.mxu0 0.0
  %2457 = vmatprep.subr.mxu0 0.0
  %2458 = vmatpush2.msra.mxu0 0.0
  %2459 = vmatprep.subr.mxu0 0.0
  %2460 = vmatpush2.msra.mxu0 0.0
  %2461 = vmatprep.subr.mxu0 0.0
  %2462 = vmatpush2.msra.mxu0 0.0
  %2463 = vmatprep.subr.mxu0 0.0
  %2464 = vmatpush2.msra.mxu0 0.0
  %2465 = vmatprep.subr.mxu0 0.0
  %2466 = vmatpush2.msra.mxu0 0.0
  %2467 = vmatprep.subr.mxu0 0.0
  %2468 = vmatpush2.msra.mxu0 0.0
  %2469 = vmatprep.subr.mxu0 0.0
  %2470 = vmatpush2.msra.mxu0 0.0
  %2471 = vmatprep.subr.mxu0 0.0
  %2472 = vmatpush2.msra.mxu0 0.0
  %2473 = vmatprep.subr.mxu0 0.0
  %2474 = vmatpush2.msra.mxu0 0.0
  %2475 = vmatprep.subr.mxu0 0.0
  %2476 = vmatpush2.msra.mxu0 0.0
  %2477 = vmatprep.subr.mxu0 0.0
  %2478 = vmatpush2.msra.mxu0 0.0
  %2479 = vmatprep.subr.mxu0 0.0
  %2480 = vmatpush2.msra.mxu0 0.0
  %2481 = vmatprep.subr.mxu0 0.0
  %2482 = vmatpush2.msra.mxu0 0.0
  %2483 = vmatprep.subr.mxu0 0.0
  %2484 = vmatpush2.msra.mxu0 0.0
  %2485 = vmatprep.subr.mxu0 0.0
  %2486 = vmatpush2.msra.mxu0 0.0
  %2487 = vmatprep.mubr.f32.mxu0 0.0
  %v2488 = vand.u32 %v1829, 4294901760
  %2489 = vmatmul.mubr.f32.gmra.mxu0 %v2488
  %v2490 = vpop.f32.mrf.mxu0
  %v2491 = vadd.f32 %v2404, %v2490
  %v2492 = vpop.f32.mrf.mxu0
  %2493 = vdwg.mxu0
  %v2494 = vsub.f32 0.0, %v2491
  %v2495 = vmul.f32 %v2494, 1.442695
  %v2496 = vpow.pop %v2495
  %v2497 = vadd.f32 %v2496, 1.0
  %v2498 = vrcp.pop %v2497
  %v2499 = vmul.f32 1.0, %v2498
  %vm2500 = vcmask 25600
  %2501 = vst.msk [vmem:[%s7] sm:$0x3] %vm2500, %v2499
  // Predicated region
  $region30: #{_lambda_.1} parent=0 // pred_check
    _
  $region31: #{_lambda_.1} parent=0 // pred_check_branch
    %2503 = sbr.rel (0) target = $region33
  $region32: #{_lambda_.1} parent=0 // pred_region
    _
  $region33: #{_lambda_.1} parent=0 // pred_fallthru
    _
  // Predicated region
  $region34: #{_lambda_.1} parent=0 // pred_check
    _
  $region35: #{_lambda_.1} parent=0 // pred_check_branch
    %2505 = sbr.rel (0) target = $region37
  $region36: #{_lambda_.1} parent=0 // pred_region
    _
  $region37: #{_lambda_.1} parent=0 // pred_fallthru
    _

</llo_original>
